<compile_context>
chip_gen: v6e
topology: v6e:2x2x1
jax: 0.10.0
libtpu: 0.0.40
codegen_flags: <defaults>
</compile_context>

<pallas_src>
import jax
import jax.numpy as jnp
from jax.experimental import pallas as pl
from jax.experimental.pallas import tpu as pltpu


# ----------------------------- model config ---------------------------------
BATCH = 8
INPUT_SIZE = 32
HIDDEN_SIZE = 32
NUM_BLOCKS = 2
NUM_CLASSES = 4
DROPOUT_RATE = 0.1                 # unused at inference

LANE = 128                         # TPU lane width; padded output dim of every layer
NUM_MATS = 2 + 2 * NUM_BLOCKS      # fc, (fc1, fc2) per block, fc_out
K_ROWS = HIDDEN_SIZE               # contraction dim of every layer (== INPUT_SIZE here)
BIAS_ROWS = 8                      # one sublane tile holding the replicated bias
PARAM_ROWS = K_ROWS + BIAS_ROWS    # 40 -> multiple of 8 (sublane aligned)

assert INPUT_SIZE == HIDDEN_SIZE, "uniform K=32 slab layout assumes input==hidden"
assert BATCH <= BIAS_ROWS
assert PARAM_ROWS % 8 == 0

_PRECISION = jax.lax.Precision.HIGHEST


def _gelu_exact(v):
    # nn.GELU() default: exact erf-based GELU.  GELU(0) == 0, so zero-padded
    # lanes stay exactly zero through the whole network.
    return 0.5 * v * (1.0 + jax.lax.erf(v * (1.0 / jnp.sqrt(2.0)).astype(v.dtype)))


def _dot(a, b):
    return jnp.dot(a, b, preferred_element_type=jnp.float32, precision=_PRECISION)


# ------------------------------- kernel --------------------------------------
def linear_resnet_kernel(x_ref, p_ref, o_ref):
    """Single-grid-point kernel; all operands resident in VMEM.

    x_ref: [B, INPUT_SIZE]                 input activations
    p_ref: [NUM_MATS, PARAM_ROWS, LANE]    fused param slab:
                                           rows 0..K_ROWS-1          = W (y = x @ W)
                                           rows K_ROWS..K_ROWS+B-1   = bias (replicated)
    o_ref: [B, LANE]                       lane-dense logits (first NUM_CLASSES valid)
    """
    x = x_ref[...]                                     # [B, 32]

    def layer(idx, lhs):
        mat = p_ref[idx]                               # [PARAM_ROWS, LANE]
        w = mat[:K_ROWS, :]                            # [32, 128]
        b = mat[K_ROWS:K_ROWS + BATCH, :]              # [B, 128] -> plain vadd
        return _dot(lhs, w) + b

    # --- TopoNet.fc : Linear(input, hidden) + GELU ---------------------------
    h = _gelu_exact(layer(0, x))                       # [B, 128]; lanes >= HIDDEN stay 0

    # --- TopoNet.res_blocks : statically unrolled residual blocks ------------
    for i in range(NUM_BLOCKS):
        out = _gelu_exact(layer(1 + 2 * i, h[:, :HIDDEN_SIZE]))
        out = layer(2 + 2 * i, out[:, :HIDDEN_SIZE]) + h   # residual add
        h = _gelu_exact(out)

    # --- TopoNet.fc_out : Dropout (identity) + Linear(hidden, classes) -------
    logits = layer(NUM_MATS - 1, h[:, :HIDDEN_SIZE])
    o_ref[...] = logits.astype(o_ref.dtype)            # full 128-lane unmasked store


# ------------------------------- wrapper --------------------------------------
@jax.jit
def linear_resnet_forward_padded(x, p_slab):
    vmem = lambda: pl.BlockSpec(memory_space=pltpu.MemorySpace.VMEM)
    # grid=() single invocation: params (~120 KiB) + activations fit trivially
    # in VMEM on v5e/v6e/v7x; no pipelining, no cross-TC split (serial chain).
    return pl.pallas_call(
        linear_resnet_kernel,
        out_shape=jax.ShapeDtypeStruct((x.shape[0], LANE), jnp.float32),
        in_specs=[vmem(), vmem()],
        out_specs=vmem(),
    )(x, p_slab)


def linear_resnet_forward(x, p_slab):
    return linear_resnet_forward_padded(x, p_slab)[:, :NUM_CLASSES]


# ------------------------------ params ----------------------------------------
def xavier_uniform(key, fan_in, fan_out):
    limit = jnp.sqrt(6.0 / (fan_in + fan_out))
    return jax.random.uniform(
        key, (fan_in, fan_out), dtype=jnp.float32, minval=-limit, maxval=limit
    )


def init_raw_params(key):
    keys = jax.random.split(key, 2 + 2 * NUM_BLOCKS)
    raw = {
        "w_in": xavier_uniform(keys[0], INPUT_SIZE, HIDDEN_SIZE),
        "b_in": jnp.full((HIDDEN_SIZE,), 0.01, jnp.float32),
        "w1": [xavier_uniform(keys[1 + 2 * i], HIDDEN_SIZE, HIDDEN_SIZE)
               for i in range(NUM_BLOCKS)],
        "b1": [jnp.full((HIDDEN_SIZE,), 0.01, jnp.float32) for _ in range(NUM_BLOCKS)],
        "w2": [xavier_uniform(keys[2 + 2 * i], HIDDEN_SIZE, HIDDEN_SIZE)
               for i in range(NUM_BLOCKS)],
        "b2": [jnp.full((HIDDEN_SIZE,), 0.01, jnp.float32) for _ in range(NUM_BLOCKS)],
        "w_out": xavier_uniform(keys[-1], HIDDEN_SIZE, NUM_CLASSES),
        "b_out": jnp.full((NUM_CLASSES,), 0.01, jnp.float32),
    }
    return raw


def pack_params(raw, batch=BATCH):
    """Pack all Linear weights + biases into one zero-padded fused VMEM slab.

    Slab layout per matrix: rows 0..K_ROWS-1 = W (K x N, N zero-padded to 128),
    rows K_ROWS..K_ROWS+batch-1 = bias replicated over the batch (lane-padded).
    """
    p = jnp.zeros((NUM_MATS, PARAM_ROWS, LANE), jnp.float32)

    def put(p, idx, w, b):
        p = p.at[idx, : w.shape[0], : w.shape[1]].set(w)
        b_row = jnp.zeros((LANE,), jnp.float32).at[: b.shape[0]].set(b)
        p = p.at[idx, K_ROWS:K_ROWS + batch, :].set(
            jnp.broadcast_to(b_row, (batch, LANE)))
        return p

    p = put(p, 0, raw["w_in"], raw["b_in"])
    for i in range(NUM_BLOCKS):
        p = put(p, 1 + 2 * i, raw["w1"][i], raw["b1"][i])
        p = put(p, 2 + 2 * i, raw["w2"][i], raw["b2"][i])
    p = put(p, NUM_MATS - 1, raw["w_out"], raw["b_out"])
    return p


# ------------------------------ reference --------------------------------------
def reference_forward(x, raw):
    """Pure-JAX reference (exact erf GELU, HIGHEST-precision f32 matmuls)."""
    gelu = lambda v: 0.5 * v * (1.0 + jax.lax.erf(v / jnp.sqrt(2.0)))
    dot = lambda a, b: jnp.dot(a, b, precision=jax.lax.Precision.HIGHEST)
    h = gelu(dot(x, raw["w_in"]) + raw["b_in"])
    for i in range(NUM_BLOCKS):
        out = gelu(dot(h, raw["w1"][i]) + raw["b1"][i])
        out = dot(out, raw["w2"][i]) + raw["b2"][i] + h
        h = gelu(out)
    return dot(h, raw["w_out"]) + raw["b_out"]


# --------------------------------- main -----------------------------------------
if __name__ == "__main__":
    key = jax.random.PRNGKey(0)
    k_x, k_p = jax.random.split(key)

    x = jax.random.normal(k_x, (BATCH, INPUT_SIZE), dtype=jnp.float32)
    raw = init_raw_params(k_p)
    p_slab = pack_params(raw)

    padded = linear_resnet_forward_padded(x, p_slab)
    padded = jax.block_until_ready(padded)

    # Guard the zero-pad invariant: lanes >= NUM_CLASSES must be exactly 0.
    assert padded.shape == (BATCH, LANE)
    assert bool(jnp.all(padded[:, NUM_CLASSES:] == 0.0)), "padded lanes not exactly zero"

    out = padded[:, :NUM_CLASSES]
    ref = reference_forward(x, raw)
    assert out.shape == (BATCH, NUM_CLASSES)
    assert jnp.allclose(out, ref, atol=1e-5, rtol=1e-5), "mismatch vs JAX reference"

    print("KERNEL_OK")
</pallas_src>

<mosaic_0001>
module attributes {stable_mosaic.version = 11 : i64} {
  func.func @linear_resnet_kernel(%arg0: memref<8x32xf32, #tpu.memory_space<vmem>>, %arg1: memref<6x40x128xf32, #tpu.memory_space<vmem>>, %arg2: memref<8x128xf32, #tpu.memory_space<vmem>>) attributes {dimension_semantics = [], scalar_prefetch = 0 : i64, scratch_operands = 0 : i64, tpu.core_type = #tpu.core_type<tc>} {
    %c0 = arith.constant 0 : index
    %c0_0 = arith.constant 0 : index
    %0 = vector.load %arg0[%c0, %c0_0] : memref<8x32xf32, #tpu.memory_space<vmem>>, vector<8x32xf32>
    %c0_1 = arith.constant 0 : index
    %c0_2 = arith.constant 0 : index
    %c0_3 = arith.constant 0 : index
    %1 = vector.load %arg1[%c0_1, %c0_2, %c0_3] : memref<6x40x128xf32, #tpu.memory_space<vmem>>, vector<1x40x128xf32>
    %2 = vector.shape_cast %1 : vector<1x40x128xf32> to vector<40x128xf32>
    %3 = vector.extract_strided_slice %2 {offsets = [0, 0], sizes = [32, 128], strides = [1, 1]} : vector<40x128xf32> to vector<32x128xf32>
    %4 = vector.extract_strided_slice %2 {offsets = [32, 0], sizes = [8, 128], strides = [1, 1]} : vector<40x128xf32> to vector<8x128xf32>
    %cst = arith.constant dense<0.000000e+00> : vector<8x128xf32>
    %5 = tpu.matmul %0, %3, %cst {dimension_numbers = #tpu.dot_dimension_numbers<[1], [0], [0], [1], [0, 0, 1, 1], [], []>, precision = #tpu.contract_precision<fp32>} : vector<8x32xf32>, vector<32x128xf32>, vector<8x128xf32> -> vector<8x128xf32>
    %6 = arith.addf %5, %4 : vector<8x128xf32>
    %cst_4 = arith.constant 5.000000e-01 : f32
    %7 = vector.broadcast %cst_4 : f32 to vector<8x128xf32>
    %8 = arith.mulf %7, %6 : vector<8x128xf32>
    %cst_5 = arith.constant 2.000000e+00 : f32
    %9 = math.sqrt %cst_5 : f32
    %cst_6 = arith.constant 1.000000e+00 : f32
    %10 = arith.divf %cst_6, %9 : f32
    %11 = vector.broadcast %10 : f32 to vector<8x128xf32>
    %12 = arith.mulf %6, %11 : vector<8x128xf32>
    %13 = math.erf %12 : vector<8x128xf32>
    %cst_7 = arith.constant 1.000000e+00 : f32
    %14 = vector.broadcast %cst_7 : f32 to vector<8x128xf32>
    %15 = arith.addf %14, %13 : vector<8x128xf32>
    %16 = arith.mulf %8, %15 : vector<8x128xf32>
    %17 = vector.extract_strided_slice %16 {offsets = [0, 0], sizes = [8, 32], strides = [1, 1]} : vector<8x128xf32> to vector<8x32xf32>
    %c1 = arith.constant 1 : index
    %c0_8 = arith.constant 0 : index
    %c0_9 = arith.constant 0 : index
    %18 = vector.load %arg1[%c1, %c0_8, %c0_9] : memref<6x40x128xf32, #tpu.memory_space<vmem>>, vector<1x40x128xf32>
    %19 = vector.shape_cast %18 : vector<1x40x128xf32> to vector<40x128xf32>
    %20 = vector.extract_strided_slice %19 {offsets = [0, 0], sizes = [32, 128], strides = [1, 1]} : vector<40x128xf32> to vector<32x128xf32>
    %21 = vector.extract_strided_slice %19 {offsets = [32, 0], sizes = [8, 128], strides = [1, 1]} : vector<40x128xf32> to vector<8x128xf32>
    %cst_10 = arith.constant dense<0.000000e+00> : vector<8x128xf32>
    %22 = tpu.matmul %17, %20, %cst_10 {dimension_numbers = #tpu.dot_dimension_numbers<[1], [0], [0], [1], [0, 0, 1, 1], [], []>, precision = #tpu.contract_precision<fp32>} : vector<8x32xf32>, vector<32x128xf32>, vector<8x128xf32> -> vector<8x128xf32>
    %23 = arith.addf %22, %21 : vector<8x128xf32>
    %cst_11 = arith.constant 5.000000e-01 : f32
    %24 = vector.broadcast %cst_11 : f32 to vector<8x128xf32>
    %25 = arith.mulf %24, %23 : vector<8x128xf32>
    %cst_12 = arith.constant 2.000000e+00 : f32
    %26 = math.sqrt %cst_12 : f32
    %cst_13 = arith.constant 1.000000e+00 : f32
    %27 = arith.divf %cst_13, %26 : f32
    %28 = vector.broadcast %27 : f32 to vector<8x128xf32>
    %29 = arith.mulf %23, %28 : vector<8x128xf32>
    %30 = math.erf %29 : vector<8x128xf32>
    %cst_14 = arith.constant 1.000000e+00 : f32
    %31 = vector.broadcast %cst_14 : f32 to vector<8x128xf32>
    %32 = arith.addf %31, %30 : vector<8x128xf32>
    %33 = arith.mulf %25, %32 : vector<8x128xf32>
    %34 = vector.extract_strided_slice %33 {offsets = [0, 0], sizes = [8, 32], strides = [1, 1]} : vector<8x128xf32> to vector<8x32xf32>
    %c2 = arith.constant 2 : index
    %c0_15 = arith.constant 0 : index
    %c0_16 = arith.constant 0 : index
    %35 = vector.load %arg1[%c2, %c0_15, %c0_16] : memref<6x40x128xf32, #tpu.memory_space<vmem>>, vector<1x40x128xf32>
    %36 = vector.shape_cast %35 : vector<1x40x128xf32> to vector<40x128xf32>
    %37 = vector.extract_strided_slice %36 {offsets = [0, 0], sizes = [32, 128], strides = [1, 1]} : vector<40x128xf32> to vector<32x128xf32>
    %38 = vector.extract_strided_slice %36 {offsets = [32, 0], sizes = [8, 128], strides = [1, 1]} : vector<40x128xf32> to vector<8x128xf32>
    %cst_17 = arith.constant dense<0.000000e+00> : vector<8x128xf32>
    %39 = tpu.matmul %34, %37, %cst_17 {dimension_numbers = #tpu.dot_dimension_numbers<[1], [0], [0], [1], [0, 0, 1, 1], [], []>, precision = #tpu.contract_precision<fp32>} : vector<8x32xf32>, vector<32x128xf32>, vector<8x128xf32> -> vector<8x128xf32>
    %40 = arith.addf %39, %38 : vector<8x128xf32>
    %41 = arith.addf %40, %16 : vector<8x128xf32>
    %cst_18 = arith.constant 5.000000e-01 : f32
    %42 = vector.broadcast %cst_18 : f32 to vector<8x128xf32>
    %43 = arith.mulf %42, %41 : vector<8x128xf32>
    %cst_19 = arith.constant 2.000000e+00 : f32
    %44 = math.sqrt %cst_19 : f32
    %cst_20 = arith.constant 1.000000e+00 : f32
    %45 = arith.divf %cst_20, %44 : f32
    %46 = vector.broadcast %45 : f32 to vector<8x128xf32>
    %47 = arith.mulf %41, %46 : vector<8x128xf32>
    %48 = math.erf %47 : vector<8x128xf32>
    %cst_21 = arith.constant 1.000000e+00 : f32
    %49 = vector.broadcast %cst_21 : f32 to vector<8x128xf32>
    %50 = arith.addf %49, %48 : vector<8x128xf32>
    %51 = arith.mulf %43, %50 : vector<8x128xf32>
    %52 = vector.extract_strided_slice %51 {offsets = [0, 0], sizes = [8, 32], strides = [1, 1]} : vector<8x128xf32> to vector<8x32xf32>
    %c3 = arith.constant 3 : index
    %c0_22 = arith.constant 0 : index
    %c0_23 = arith.constant 0 : index
    %53 = vector.load %arg1[%c3, %c0_22, %c0_23] : memref<6x40x128xf32, #tpu.memory_space<vmem>>, vector<1x40x128xf32>
    %54 = vector.shape_cast %53 : vector<1x40x128xf32> to vector<40x128xf32>
    %55 = vector.extract_strided_slice %54 {offsets = [0, 0], sizes = [32, 128], strides = [1, 1]} : vector<40x128xf32> to vector<32x128xf32>
    %56 = vector.extract_strided_slice %54 {offsets = [32, 0], sizes = [8, 128], strides = [1, 1]} : vector<40x128xf32> to vector<8x128xf32>
    %cst_24 = arith.constant dense<0.000000e+00> : vector<8x128xf32>
    %57 = tpu.matmul %52, %55, %cst_24 {dimension_numbers = #tpu.dot_dimension_numbers<[1], [0], [0], [1], [0, 0, 1, 1], [], []>, precision = #tpu.contract_precision<fp32>} : vector<8x32xf32>, vector<32x128xf32>, vector<8x128xf32> -> vector<8x128xf32>
    %58 = arith.addf %57, %56 : vector<8x128xf32>
    %cst_25 = arith.constant 5.000000e-01 : f32
    %59 = vector.broadcast %cst_25 : f32 to vector<8x128xf32>
    %60 = arith.mulf %59, %58 : vector<8x128xf32>
    %cst_26 = arith.constant 2.000000e+00 : f32
    %61 = math.sqrt %cst_26 : f32
    %cst_27 = arith.constant 1.000000e+00 : f32
    %62 = arith.divf %cst_27, %61 : f32
    %63 = vector.broadcast %62 : f32 to vector<8x128xf32>
    %64 = arith.mulf %58, %63 : vector<8x128xf32>
    %65 = math.erf %64 : vector<8x128xf32>
    %cst_28 = arith.constant 1.000000e+00 : f32
    %66 = vector.broadcast %cst_28 : f32 to vector<8x128xf32>
    %67 = arith.addf %66, %65 : vector<8x128xf32>
    %68 = arith.mulf %60, %67 : vector<8x128xf32>
    %69 = vector.extract_strided_slice %68 {offsets = [0, 0], sizes = [8, 32], strides = [1, 1]} : vector<8x128xf32> to vector<8x32xf32>
    %c4 = arith.constant 4 : index
    %c0_29 = arith.constant 0 : index
    %c0_30 = arith.constant 0 : index
    %70 = vector.load %arg1[%c4, %c0_29, %c0_30] : memref<6x40x128xf32, #tpu.memory_space<vmem>>, vector<1x40x128xf32>
    %71 = vector.shape_cast %70 : vector<1x40x128xf32> to vector<40x128xf32>
    %72 = vector.extract_strided_slice %71 {offsets = [0, 0], sizes = [32, 128], strides = [1, 1]} : vector<40x128xf32> to vector<32x128xf32>
    %73 = vector.extract_strided_slice %71 {offsets = [32, 0], sizes = [8, 128], strides = [1, 1]} : vector<40x128xf32> to vector<8x128xf32>
    %cst_31 = arith.constant dense<0.000000e+00> : vector<8x128xf32>
    %74 = tpu.matmul %69, %72, %cst_31 {dimension_numbers = #tpu.dot_dimension_numbers<[1], [0], [0], [1], [0, 0, 1, 1], [], []>, precision = #tpu.contract_precision<fp32>} : vector<8x32xf32>, vector<32x128xf32>, vector<8x128xf32> -> vector<8x128xf32>
    %75 = arith.addf %74, %73 : vector<8x128xf32>
    %76 = arith.addf %75, %51 : vector<8x128xf32>
    %cst_32 = arith.constant 5.000000e-01 : f32
    %77 = vector.broadcast %cst_32 : f32 to vector<8x128xf32>
    %78 = arith.mulf %77, %76 : vector<8x128xf32>
    %cst_33 = arith.constant 2.000000e+00 : f32
    %79 = math.sqrt %cst_33 : f32
    %cst_34 = arith.constant 1.000000e+00 : f32
    %80 = arith.divf %cst_34, %79 : f32
    %81 = vector.broadcast %80 : f32 to vector<8x128xf32>
    %82 = arith.mulf %76, %81 : vector<8x128xf32>
    %83 = math.erf %82 : vector<8x128xf32>
    %cst_35 = arith.constant 1.000000e+00 : f32
    %84 = vector.broadcast %cst_35 : f32 to vector<8x128xf32>
    %85 = arith.addf %84, %83 : vector<8x128xf32>
    %86 = arith.mulf %78, %85 : vector<8x128xf32>
    %87 = vector.extract_strided_slice %86 {offsets = [0, 0], sizes = [8, 32], strides = [1, 1]} : vector<8x128xf32> to vector<8x32xf32>
    %c5 = arith.constant 5 : index
    %c0_36 = arith.constant 0 : index
    %c0_37 = arith.constant 0 : index
    %88 = vector.load %arg1[%c5, %c0_36, %c0_37] : memref<6x40x128xf32, #tpu.memory_space<vmem>>, vector<1x40x128xf32>
    %89 = vector.shape_cast %88 : vector<1x40x128xf32> to vector<40x128xf32>
    %90 = vector.extract_strided_slice %89 {offsets = [0, 0], sizes = [32, 128], strides = [1, 1]} : vector<40x128xf32> to vector<32x128xf32>
    %91 = vector.extract_strided_slice %89 {offsets = [32, 0], sizes = [8, 128], strides = [1, 1]} : vector<40x128xf32> to vector<8x128xf32>
    %cst_38 = arith.constant dense<0.000000e+00> : vector<8x128xf32>
    %92 = tpu.matmul %87, %90, %cst_38 {dimension_numbers = #tpu.dot_dimension_numbers<[1], [0], [0], [1], [0, 0, 1, 1], [], []>, precision = #tpu.contract_precision<fp32>} : vector<8x32xf32>, vector<32x128xf32>, vector<8x128xf32> -> vector<8x128xf32>
    %93 = arith.addf %92, %91 : vector<8x128xf32>
    %c0_39 = arith.constant 0 : index
    %c0_40 = arith.constant 0 : index
    %94 = vector.load %arg2[%c0_39, %c0_40] : memref<8x128xf32, #tpu.memory_space<vmem>>, vector<8x128xf32>
    tpu.vector_store %arg2[%c0_39, %c0_40], %93 {strides = array<i32>} : memref<8x128xf32, #tpu.memory_space<vmem>>, vector<8x128xf32>,
    return
  }
}

</mosaic_0001>

<llo_original>
// kernel: linear_resnet_forward_padded.1
$region0: #{linear_resnet_forward_padded.1}
  #allocation0 [shape = 'u32[]', space=smem, size = 0x4, offset = 0x4, fixed_abs, tag = 'smem constant byte address 0x4 - core index']
  #allocation1 [shape = 'u32[144,128]{1,0:T(1,128)}', space=vmem, size = 0x12000, scoped, tag = 'internal scratch']
  %s0 = inlined_call_operand.hbm [shape: f32[8,32], index: 0, kind: input, shape index: {}]
  %s1 = inlined_call_operand.hbm [shape: f32[6,40,128], index: 1, kind: input, shape index: {}]
  %s2 = inlined_call_operand.hbm [shape: f32[8,128], index: 2, kind: output, shape index: {}]
  %s3 = sld [smem:[#allocation0]]
  $region26: #{linear_resnet_forward_padded.1} parent=0
    _
  %s5 = ssub.s32 1, %s3
  %s6 = scalar_select 0, %s5, %s3
  $region1: #{linear_resnet_forward_padded.1} parent=0
    #allocation2 [shape = 'u8[4096]{0}', space=vmem, size = 0x1000, scoped, tag = 'input window, operand 0, single buffered']
    #allocation3 [shape = 's32[1]{0}', space=sflag, size = 0x4, scoped, tag = 'scoped memory for linear_resnet_forward_padded.1']
    #allocation4 [shape = 's32[1]{0}', space=sflag, size = 0x4, scoped, tag = 'scoped memory for linear_resnet_forward_padded.1']
    #allocation5 [shape = 'u8[122880]{0}', space=vmem, size = 0x1e000, scoped, tag = 'input window, operand 1, single buffered']
    #allocation6 [shape = 's32[1]{0}', space=sflag, size = 0x4, scoped, tag = 'scoped memory for linear_resnet_forward_padded.1']
    #allocation7 [shape = 'u8[4096]{0}', space=vmem, size = 0x1000, scoped, tag = 'output window, operand 0, single buffered']
    %7 = vsyncpa [#allocation3], 0
    %8 = vsyncpa [#allocation6], 0
    %9 = vsyncpa [#allocation4], 0
    // Predicated region
    $region2: #{linear_resnet_forward_padded.1} parent=1 // pred_check
      _
    $region3: #{linear_resnet_forward_padded.1} parent=1 // pred_check_branch
      %11 = sbr.rel (0) target = $region5
    $region4: #{linear_resnet_forward_padded.1} parent=1 // pred_region
      %s13 = ssub.s32 128, 128
      %14 = vsyncadd [#allocation3], %s13
      %s16 = sshll.u32 [#allocation2], 4
      %s17 = int_to_ptr.vmem [resolvable:$true] %s16
      %19 = dma.hbm_to_vmem [thread:$0]  %s0, 128, %s17, [#allocation3]
    $region5: #{linear_resnet_forward_padded.1} parent=1 // pred_fallthru
      _
    // Predicated region
    $region6: #{linear_resnet_forward_padded.1} parent=1 // pred_check
      _
    $region7: #{linear_resnet_forward_padded.1} parent=1 // pred_check_branch
      %21 = sbr.rel (0) target = $region9
    $region8: #{linear_resnet_forward_padded.1} parent=1 // pred_region
      %s23 = ssub.s32 3840, 3840
      %24 = vsyncadd [#allocation6], %s23
      %s25 = sshll.u32 [#allocation5], 4
      %s26 = int_to_ptr.vmem [resolvable:$true] %s25
      %31 = dma.hbm_to_vmem [thread:$0]  %s1, 3840, %s26, [#allocation6], 128, 128, 8
    $region9: #{linear_resnet_forward_padded.1} parent=1 // pred_fallthru
      _
    // Predicated region
    $region10: #{linear_resnet_forward_padded.1} parent=1 // pred_check
      _
    $region11: #{linear_resnet_forward_padded.1} parent=1 // pred_check_branch
      %33 = sbr.rel (0) target = $region13
    $region12: #{linear_resnet_forward_padded.1} parent=1 // pred_region
      %34 = dma.done [#allocation3], 128
    $region13: #{linear_resnet_forward_padded.1} parent=1 // pred_fallthru
      _
    // Predicated region
    $region14: #{linear_resnet_forward_padded.1} parent=1 // pred_check
      _
    $region15: #{linear_resnet_forward_padded.1} parent=1 // pred_check_branch
      %36 = sbr.rel (0) target = $region17
    $region16: #{linear_resnet_forward_padded.1} parent=1 // pred_region
      %37 = dma.done [#allocation6], 3840
    $region17: #{linear_resnet_forward_padded.1} parent=1 // pred_fallthru
      _
    %v38 = vld [vmem:[#allocation2] sm:$0xff]
    %v39 = vld [vmem:[#allocation5] sm:$0xff]
    %v40 = vld [vmem:[#allocation5 + $0x8] sm:$0xff]
    %v41 = vld [vmem:[#allocation5 + $0x10] sm:$0xff]
    %v42 = vld [vmem:[#allocation5 + $0x18] sm:$0xff]
    %v43 = vld [vmem:[#allocation5 + $0x20] sm:$0xff]
    %vm44 = vcmask 261120
    %v46 = vsel %vm44, %v38, 0
    %48 = vmatprep.subr.mxu0 0.0
    %49 = vmatpush1.msra.mxu0 0.0
    %50 = vmatprep.subr.mxu0 0.0
    %51 = vmatpush1.msra.mxu0 0.0
    %52 = vmatprep.subr.mxu0 0.0
    %53 = vmatpush1.msra.mxu0 0.0
    %54 = vmatprep.subr.mxu0 0.0
    %55 = vmatpush1.msra.mxu0 0.0
    %56 = vmatprep.subr.mxu0 0.0
    %57 = vmatpush1.msra.mxu0 0.0
    %58 = vmatprep.subr.mxu0 0.0
    %59 = vmatpush1.msra.mxu0 0.0
    %60 = vmatprep.subr.mxu0 0.0
    %61 = vmatpush1.msra.mxu0 0.0
    %62 = vmatprep.subr.mxu0 0.0
    %63 = vmatpush1.msra.mxu0 0.0
    %64 = vmatprep.subr.mxu0 0.0
    %65 = vmatpush1.msra.mxu0 0.0
    %66 = vmatprep.subr.mxu0 0.0
    %67 = vmatpush1.msra.mxu0 0.0
    %68 = vmatprep.subr.mxu0 0.0
    %69 = vmatpush1.msra.mxu0 0.0
    %70 = vmatprep.subr.mxu0 0.0
    %71 = vmatpush1.msra.mxu0 0.0
    %72 = vmatprep.subr.mxu0 0.0
    %v73 = vand.u32 %v42, 4294901760
    %74 = vmatpush1.msra.mxu0 %v73
    %75 = vmatprep.subr.mxu0 0.0
    %v76 = vand.u32 %v41, 4294901760
    %77 = vmatpush1.msra.mxu0 %v76
    %78 = vmatprep.subr.mxu0 0.0
    %v79 = vand.u32 %v40, 4294901760
    %80 = vmatpush1.msra.mxu0 %v79
    %81 = vmatprep.subr.mxu0 0.0
    %v82 = vand.u32 %v39, 4294901760
    %83 = vmatpush1.msra.mxu0 %v82
    %84 = vmatprep.subr.mxu0 0.0
    %85 = vmatpush2.msra.mxu0 0.0
    %86 = vmatprep.subr.mxu0 0.0
    %87 = vmatpush2.msra.mxu0 0.0
    %88 = vmatprep.subr.mxu0 0.0
    %89 = vmatpush2.msra.mxu0 0.0
    %90 = vmatprep.subr.mxu0 0.0
    %91 = vmatpush2.msra.mxu0 0.0
    %92 = vmatprep.subr.mxu0 0.0
    %93 = vmatpush2.msra.mxu0 0.0
    %94 = vmatprep.subr.mxu0 0.0
    %95 = vmatpush2.msra.mxu0 0.0
    %96 = vmatprep.subr.mxu0 0.0
    %97 = vmatpush2.msra.mxu0 0.0
    %98 = vmatprep.subr.mxu0 0.0
    %99 = vmatpush2.msra.mxu0 0.0
    %100 = vmatprep.subr.mxu0 0.0
    %101 = vmatpush2.msra.mxu0 0.0
    %102 = vmatprep.subr.mxu0 0.0
    %103 = vmatpush2.msra.mxu0 0.0
    %104 = vmatprep.subr.mxu0 0.0
    %105 = vmatpush2.msra.mxu0 0.0
    %106 = vmatprep.subr.mxu0 0.0
    %107 = vmatpush2.msra.mxu0 0.0
    %108 = vmatprep.subr.mxu0 0.0
    %109 = vmatpush2.msra.mxu0 0.0
    %110 = vmatprep.subr.mxu0 0.0
    %111 = vmatpush2.msra.mxu0 0.0
    %112 = vmatprep.subr.mxu0 0.0
    %113 = vmatpush2.msra.mxu0 0.0
    %114 = vmatprep.subr.mxu0 0.0
    %115 = vmatpush2.msra.mxu0 0.0
    %116 = vmatprep.mubr.f32.mxu0 0.0
    %v117 = vand.u32 %v46, 4294901760
    %v118 = vsub.f32 %v46, %v117
    %v119 = vand.u32 %v118, 4294901760
    %v120 = vsub.f32 %v118, %v119
    %v121 = vand.u32 %v120, 4294901760
    %122 = vmatmul.mubr.f32.gmra.mxu0 %v121
    %v123 = vpop.f32.mrf.mxu0
    %v124 = vadd.f32 %v43, %v123
    %v125 = vpop.f32.mrf.mxu0
    %126 = vdwg.mxu0
    %127 = vmatprep.subr.mxu0 0.0
    %128 = vmatpush1.msra.mxu0 0.0
    %129 = vmatprep.subr.mxu0 0.0
    %130 = vmatpush1.msra.mxu0 0.0
    %131 = vmatprep.subr.mxu0 0.0
    %132 = vmatpush1.msra.mxu0 0.0
    %133 = vmatprep.subr.mxu0 0.0
    %134 = vmatpush1.msra.mxu0 0.0
    %135 = vmatprep.subr.mxu0 0.0
    %136 = vmatpush1.msra.mxu0 0.0
    %137 = vmatprep.subr.mxu0 0.0
    %138 = vmatpush1.msra.mxu0 0.0
    %139 = vmatprep.subr.mxu0 0.0
    %140 = vmatpush1.msra.mxu0 0.0
    %141 = vmatprep.subr.mxu0 0.0
    %142 = vmatpush1.msra.mxu0 0.0
    %143 = vmatprep.subr.mxu0 0.0
    %144 = vmatpush1.msra.mxu0 0.0
    %145 = vmatprep.subr.mxu0 0.0
    %146 = vmatpush1.msra.mxu0 0.0
    %147 = vmatprep.subr.mxu0 0.0
    %148 = vmatpush1.msra.mxu0 0.0
    %149 = vmatprep.subr.mxu0 0.0
    %150 = vmatpush1.msra.mxu0 0.0
    %151 = vmatprep.subr.mxu0 0.0
    %v152 = vand.u32 %v42, 4294901760
    %v153 = vsub.f32 %v42, %v152
    %v154 = vand.u32 %v153, 4294901760
    %v155 = vsub.f32 %v153, %v154
    %v156 = vand.u32 %v155, 4294901760
    %157 = vmatpush1.msra.mxu0 %v156
    %158 = vmatprep.subr.mxu0 0.0
    %v159 = vand.u32 %v41, 4294901760
    %v160 = vsub.f32 %v41, %v159
    %v161 = vand.u32 %v160, 4294901760
    %v162 = vsub.f32 %v160, %v161
    %v163 = vand.u32 %v162, 4294901760
    %164 = vmatpush1.msra.mxu0 %v163
    %165 = vmatprep.subr.mxu0 0.0
    %v166 = vand.u32 %v40, 4294901760
    %v167 = vsub.f32 %v40, %v166
    %v168 = vand.u32 %v167, 4294901760
    %v169 = vsub.f32 %v167, %v168
    %v170 = vand.u32 %v169, 4294901760
    %171 = vmatpush1.msra.mxu0 %v170
    %172 = vmatprep.subr.mxu0 0.0
    %v173 = vand.u32 %v39, 4294901760
    %v174 = vsub.f32 %v39, %v173
    %v175 = vand.u32 %v174, 4294901760
    %v176 = vsub.f32 %v174, %v175
    %v177 = vand.u32 %v176, 4294901760
    %178 = vmatpush1.msra.mxu0 %v177
    %179 = vmatprep.subr.mxu0 0.0
    %180 = vmatpush2.msra.mxu0 0.0
    %181 = vmatprep.subr.mxu0 0.0
    %182 = vmatpush2.msra.mxu0 0.0
    %183 = vmatprep.subr.mxu0 0.0
    %184 = vmatpush2.msra.mxu0 0.0
    %185 = vmatprep.subr.mxu0 0.0
    %186 = vmatpush2.msra.mxu0 0.0
    %187 = vmatprep.subr.mxu0 0.0
    %188 = vmatpush2.msra.mxu0 0.0
    %189 = vmatprep.subr.mxu0 0.0
    %190 = vmatpush2.msra.mxu0 0.0
    %191 = vmatprep.subr.mxu0 0.0
    %192 = vmatpush2.msra.mxu0 0.0
    %193 = vmatprep.subr.mxu0 0.0
    %194 = vmatpush2.msra.mxu0 0.0
    %195 = vmatprep.subr.mxu0 0.0
    %196 = vmatpush2.msra.mxu0 0.0
    %197 = vmatprep.subr.mxu0 0.0
    %198 = vmatpush2.msra.mxu0 0.0
    %199 = vmatprep.subr.mxu0 0.0
    %200 = vmatpush2.msra.mxu0 0.0
    %201 = vmatprep.subr.mxu0 0.0
    %202 = vmatpush2.msra.mxu0 0.0
    %203 = vmatprep.subr.mxu0 0.0
    %204 = vmatpush2.msra.mxu0 0.0
    %205 = vmatprep.subr.mxu0 0.0
    %206 = vmatpush2.msra.mxu0 0.0
    %207 = vmatprep.subr.mxu0 0.0
    %208 = vmatpush2.msra.mxu0 0.0
    %209 = vmatprep.subr.mxu0 0.0
    %210 = vmatpush2.msra.mxu0 0.0
    %211 = vmatprep.mubr.f32.mxu0 0.0
    %v212 = vand.u32 %v46, 4294901760
    %213 = vmatmul.mubr.f32.gmra.mxu0 %v212
    %v214 = vpop.f32.mrf.mxu0
    %v215 = vadd.f32 %v124, %v214
    %v216 = vpop.f32.mrf.mxu0
    %217 = vdwg.mxu0
    %218 = vmatprep.subr.mxu0 0.0
    %219 = vmatpush1.msra.mxu0 0.0
    %220 = vmatprep.subr.mxu0 0.0
    %221 = vmatpush1.msra.mxu0 0.0
    %222 = vmatprep.subr.mxu0 0.0
    %223 = vmatpush1.msra.mxu0 0.0
    %224 = vmatprep.subr.mxu0 0.0
    %225 = vmatpush1.msra.mxu0 0.0
    %226 = vmatprep.subr.mxu0 0.0
    %227 = vmatpush1.msra.mxu0 0.0
    %228 = vmatprep.subr.mxu0 0.0
    %229 = vmatpush1.msra.mxu0 0.0
    %230 = vmatprep.subr.mxu0 0.0
    %231 = vmatpush1.msra.mxu0 0.0
    %232 = vmatprep.subr.mxu0 0.0
    %233 = vmatpush1.msra.mxu0 0.0
    %234 = vmatprep.subr.mxu0 0.0
    %235 = vmatpush1.msra.mxu0 0.0
    %236 = vmatprep.subr.mxu0 0.0
    %237 = vmatpush1.msra.mxu0 0.0
    %238 = vmatprep.subr.mxu0 0.0
    %239 = vmatpush1.msra.mxu0 0.0
    %240 = vmatprep.subr.mxu0 0.0
    %241 = vmatpush1.msra.mxu0 0.0
    %242 = vmatprep.subr.mxu0 0.0
    %v243 = vand.u32 %v42, 4294901760
    %v244 = vsub.f32 %v42, %v243
    %245 = vmatpush1.msra.mxu0 %v244
    %246 = vmatprep.subr.mxu0 0.0
    %v247 = vand.u32 %v41, 4294901760
    %v248 = vsub.f32 %v41, %v247
    %249 = vmatpush1.msra.mxu0 %v248
    %250 = vmatprep.subr.mxu0 0.0
    %v251 = vand.u32 %v40, 4294901760
    %v252 = vsub.f32 %v40, %v251
    %253 = vmatpush1.msra.mxu0 %v252
    %254 = vmatprep.subr.mxu0 0.0
    %v255 = vand.u32 %v39, 4294901760
    %v256 = vsub.f32 %v39, %v255
    %257 = vmatpush1.msra.mxu0 %v256
    %258 = vmatprep.subr.mxu0 0.0
    %259 = vmatpush2.msra.mxu0 0.0
    %260 = vmatprep.subr.mxu0 0.0
    %261 = vmatpush2.msra.mxu0 0.0
    %262 = vmatprep.subr.mxu0 0.0
    %263 = vmatpush2.msra.mxu0 0.0
    %264 = vmatprep.subr.mxu0 0.0
    %265 = vmatpush2.msra.mxu0 0.0
    %266 = vmatprep.subr.mxu0 0.0
    %267 = vmatpush2.msra.mxu0 0.0
    %268 = vmatprep.subr.mxu0 0.0
    %269 = vmatpush2.msra.mxu0 0.0
    %270 = vmatprep.subr.mxu0 0.0
    %271 = vmatpush2.msra.mxu0 0.0
    %272 = vmatprep.subr.mxu0 0.0
    %273 = vmatpush2.msra.mxu0 0.0
    %274 = vmatprep.subr.mxu0 0.0
    %275 = vmatpush2.msra.mxu0 0.0
    %276 = vmatprep.subr.mxu0 0.0
    %277 = vmatpush2.msra.mxu0 0.0
    %278 = vmatprep.subr.mxu0 0.0
    %279 = vmatpush2.msra.mxu0 0.0
    %280 = vmatprep.subr.mxu0 0.0
    %281 = vmatpush2.msra.mxu0 0.0
    %282 = vmatprep.subr.mxu0 0.0
    %283 = vmatpush2.msra.mxu0 0.0
    %284 = vmatprep.subr.mxu0 0.0
    %285 = vmatpush2.msra.mxu0 0.0
    %286 = vmatprep.subr.mxu0 0.0
    %287 = vmatpush2.msra.mxu0 0.0
    %288 = vmatprep.subr.mxu0 0.0
    %289 = vmatpush2.msra.mxu0 0.0
    %290 = vmatprep.mubr.f32.mxu0 0.0
    %v291 = vand.u32 %v46, 4294901760
    %v292 = vsub.f32 %v46, %v291
    %293 = vmatmul.mubr.f32.gmra.mxu0 %v292
    %v294 = vpop.f32.mrf.mxu0
    %v295 = vadd.f32 %v215, %v294
    %v296 = vpop.f32.mrf.mxu0
    %297 = vdwg.mxu0
    %298 = vmatprep.subr.mxu0 0.0
    %299 = vmatpush1.msra.mxu0 0.0
    %300 = vmatprep.subr.mxu0 0.0
    %301 = vmatpush1.msra.mxu0 0.0
    %302 = vmatprep.subr.mxu0 0.0
    %303 = vmatpush1.msra.mxu0 0.0
    %304 = vmatprep.subr.mxu0 0.0
    %305 = vmatpush1.msra.mxu0 0.0
    %306 = vmatprep.subr.mxu0 0.0
    %307 = vmatpush1.msra.mxu0 0.0
    %308 = vmatprep.subr.mxu0 0.0
    %309 = vmatpush1.msra.mxu0 0.0
    %310 = vmatprep.subr.mxu0 0.0
    %311 = vmatpush1.msra.mxu0 0.0
    %312 = vmatprep.subr.mxu0 0.0
    %313 = vmatpush1.msra.mxu0 0.0
    %314 = vmatprep.subr.mxu0 0.0
    %315 = vmatpush1.msra.mxu0 0.0
    %316 = vmatprep.subr.mxu0 0.0
    %317 = vmatpush1.msra.mxu0 0.0
    %318 = vmatprep.subr.mxu0 0.0
    %319 = vmatpush1.msra.mxu0 0.0
    %320 = vmatprep.subr.mxu0 0.0
    %321 = vmatpush1.msra.mxu0 0.0
    %322 = vmatprep.subr.mxu0 0.0
    %v323 = vand.u32 %v42, 4294901760
    %324 = vmatpush1.msra.mxu0 %v323
    %325 = vmatprep.subr.mxu0 0.0
    %v326 = vand.u32 %v41, 4294901760
    %327 = vmatpush1.msra.mxu0 %v326
    %328 = vmatprep.subr.mxu0 0.0
    %v329 = vand.u32 %v40, 4294901760
    %330 = vmatpush1.msra.mxu0 %v329
    %331 = vmatprep.subr.mxu0 0.0
    %v332 = vand.u32 %v39, 4294901760
    %333 = vmatpush1.msra.mxu0 %v332
    %334 = vmatprep.subr.mxu0 0.0
    %335 = vmatpush2.msra.mxu0 0.0
    %336 = vmatprep.subr.mxu0 0.0
    %337 = vmatpush2.msra.mxu0 0.0
    %338 = vmatprep.subr.mxu0 0.0
    %339 = vmatpush2.msra.mxu0 0.0
    %340 = vmatprep.subr.mxu0 0.0
    %341 = vmatpush2.msra.mxu0 0.0
    %342 = vmatprep.subr.mxu0 0.0
    %343 = vmatpush2.msra.mxu0 0.0
    %344 = vmatprep.subr.mxu0 0.0
    %345 = vmatpush2.msra.mxu0 0.0
    %346 = vmatprep.subr.mxu0 0.0
    %347 = vmatpush2.msra.mxu0 0.0
    %348 = vmatprep.subr.mxu0 0.0
    %349 = vmatpush2.msra.mxu0 0.0
    %350 = vmatprep.subr.mxu0 0.0
    %351 = vmatpush2.msra.mxu0 0.0
    %352 = vmatprep.subr.mxu0 0.0
    %353 = vmatpush2.msra.mxu0 0.0
    %354 = vmatprep.subr.mxu0 0.0
    %355 = vmatpush2.msra.mxu0 0.0
    %356 = vmatprep.subr.mxu0 0.0
    %357 = vmatpush2.msra.mxu0 0.0
    %358 = vmatprep.subr.mxu0 0.0
    %359 = vmatpush2.msra.mxu0 0.0
    %360 = vmatprep.subr.mxu0 0.0
    %361 = vmatpush2.msra.mxu0 0.0
    %362 = vmatprep.subr.mxu0 0.0
    %363 = vmatpush2.msra.mxu0 0.0
    %364 = vmatprep.subr.mxu0 0.0
    %365 = vmatpush2.msra.mxu0 0.0
    %366 = vmatprep.mubr.f32.mxu0 0.0
    %v367 = vand.u32 %v46, 4294901760
    %v368 = vsub.f32 %v46, %v367
    %v369 = vand.u32 %v368, 4294901760
    %370 = vmatmul.mubr.f32.gmra.mxu0 %v369
    %v371 = vpop.f32.mrf.mxu0
    %v372 = vadd.f32 %v295, %v371
    %v373 = vpop.f32.mrf.mxu0
    %374 = vdwg.mxu0
    %375 = vmatprep.subr.mxu0 0.0
    %376 = vmatpush1.msra.mxu0 0.0
    %377 = vmatprep.subr.mxu0 0.0
    %378 = vmatpush1.msra.mxu0 0.0
    %379 = vmatprep.subr.mxu0 0.0
    %380 = vmatpush1.msra.mxu0 0.0
    %381 = vmatprep.subr.mxu0 0.0
    %382 = vmatpush1.msra.mxu0 0.0
    %383 = vmatprep.subr.mxu0 0.0
    %384 = vmatpush1.msra.mxu0 0.0
    %385 = vmatprep.subr.mxu0 0.0
    %386 = vmatpush1.msra.mxu0 0.0
    %387 = vmatprep.subr.mxu0 0.0
    %388 = vmatpush1.msra.mxu0 0.0
    %389 = vmatprep.subr.mxu0 0.0
    %390 = vmatpush1.msra.mxu0 0.0
    %391 = vmatprep.subr.mxu0 0.0
    %392 = vmatpush1.msra.mxu0 0.0
    %393 = vmatprep.subr.mxu0 0.0
    %394 = vmatpush1.msra.mxu0 0.0
    %395 = vmatprep.subr.mxu0 0.0
    %396 = vmatpush1.msra.mxu0 0.0
    %397 = vmatprep.subr.mxu0 0.0
    %398 = vmatpush1.msra.mxu0 0.0
    %399 = vmatprep.subr.mxu0 0.0
    %v400 = vand.u32 %v42, 4294901760
    %v401 = vsub.f32 %v42, %v400
    %v402 = vand.u32 %v401, 4294901760
    %403 = vmatpush1.msra.mxu0 %v402
    %404 = vmatprep.subr.mxu0 0.0
    %v405 = vand.u32 %v41, 4294901760
    %v406 = vsub.f32 %v41, %v405
    %v407 = vand.u32 %v406, 4294901760
    %408 = vmatpush1.msra.mxu0 %v407
    %409 = vmatprep.subr.mxu0 0.0
    %v410 = vand.u32 %v40, 4294901760
    %v411 = vsub.f32 %v40, %v410
    %v412 = vand.u32 %v411, 4294901760
    %413 = vmatpush1.msra.mxu0 %v412
    %414 = vmatprep.subr.mxu0 0.0
    %v415 = vand.u32 %v39, 4294901760
    %v416 = vsub.f32 %v39, %v415
    %v417 = vand.u32 %v416, 4294901760
    %418 = vmatpush1.msra.mxu0 %v417
    %419 = vmatprep.subr.mxu0 0.0
    %420 = vmatpush2.msra.mxu0 0.0
    %421 = vmatprep.subr.mxu0 0.0
    %422 = vmatpush2.msra.mxu0 0.0
    %423 = vmatprep.subr.mxu0 0.0
    %424 = vmatpush2.msra.mxu0 0.0
    %425 = vmatprep.subr.mxu0 0.0
    %426 = vmatpush2.msra.mxu0 0.0
    %427 = vmatprep.subr.mxu0 0.0
    %428 = vmatpush2.msra.mxu0 0.0
    %429 = vmatprep.subr.mxu0 0.0
    %430 = vmatpush2.msra.mxu0 0.0
    %431 = vmatprep.subr.mxu0 0.0
    %432 = vmatpush2.msra.mxu0 0.0
    %433 = vmatprep.subr.mxu0 0.0
    %434 = vmatpush2.msra.mxu0 0.0
    %435 = vmatprep.subr.mxu0 0.0
    %436 = vmatpush2.msra.mxu0 0.0
    %437 = vmatprep.subr.mxu0 0.0
    %438 = vmatpush2.msra.mxu0 0.0
    %439 = vmatprep.subr.mxu0 0.0
    %440 = vmatpush2.msra.mxu0 0.0
    %441 = vmatprep.subr.mxu0 0.0
    %442 = vmatpush2.msra.mxu0 0.0
    %443 = vmatprep.subr.mxu0 0.0
    %444 = vmatpush2.msra.mxu0 0.0
    %445 = vmatprep.subr.mxu0 0.0
    %446 = vmatpush2.msra.mxu0 0.0
    %447 = vmatprep.subr.mxu0 0.0
    %448 = vmatpush2.msra.mxu0 0.0
    %449 = vmatprep.subr.mxu0 0.0
    %450 = vmatpush2.msra.mxu0 0.0
    %451 = vmatprep.mubr.f32.mxu0 0.0
    %v452 = vand.u32 %v46, 4294901760
    %453 = vmatmul.mubr.f32.gmra.mxu0 %v452
    %v454 = vpop.f32.mrf.mxu0
    %v455 = vadd.f32 %v372, %v454
    %v456 = vpop.f32.mrf.mxu0
    %457 = vdwg.mxu0
    %458 = vmatprep.subr.mxu0 0.0
    %459 = vmatpush1.msra.mxu0 0.0
    %460 = vmatprep.subr.mxu0 0.0
    %461 = vmatpush1.msra.mxu0 0.0
    %462 = vmatprep.subr.mxu0 0.0
    %463 = vmatpush1.msra.mxu0 0.0
    %464 = vmatprep.subr.mxu0 0.0
    %465 = vmatpush1.msra.mxu0 0.0
    %466 = vmatprep.subr.mxu0 0.0
    %467 = vmatpush1.msra.mxu0 0.0
    %468 = vmatprep.subr.mxu0 0.0
    %469 = vmatpush1.msra.mxu0 0.0
    %470 = vmatprep.subr.mxu0 0.0
    %471 = vmatpush1.msra.mxu0 0.0
    %472 = vmatprep.subr.mxu0 0.0
    %473 = vmatpush1.msra.mxu0 0.0
    %474 = vmatprep.subr.mxu0 0.0
    %475 = vmatpush1.msra.mxu0 0.0
    %476 = vmatprep.subr.mxu0 0.0
    %477 = vmatpush1.msra.mxu0 0.0
    %478 = vmatprep.subr.mxu0 0.0
    %479 = vmatpush1.msra.mxu0 0.0
    %480 = vmatprep.subr.mxu0 0.0
    %481 = vmatpush1.msra.mxu0 0.0
    %482 = vmatprep.subr.mxu0 0.0
    %v483 = vand.u32 %v42, 4294901760
    %484 = vmatpush1.msra.mxu0 %v483
    %485 = vmatprep.subr.mxu0 0.0
    %v486 = vand.u32 %v41, 4294901760
    %487 = vmatpush1.msra.mxu0 %v486
    %488 = vmatprep.subr.mxu0 0.0
    %v489 = vand.u32 %v40, 4294901760
    %490 = vmatpush1.msra.mxu0 %v489
    %491 = vmatprep.subr.mxu0 0.0
    %v492 = vand.u32 %v39, 4294901760
    %493 = vmatpush1.msra.mxu0 %v492
    %494 = vmatprep.subr.mxu0 0.0
    %495 = vmatpush2.msra.mxu0 0.0
    %496 = vmatprep.subr.mxu0 0.0
    %497 = vmatpush2.msra.mxu0 0.0
    %498 = vmatprep.subr.mxu0 0.0
    %499 = vmatpush2.msra.mxu0 0.0
    %500 = vmatprep.subr.mxu0 0.0
    %501 = vmatpush2.msra.mxu0 0.0
    %502 = vmatprep.subr.mxu0 0.0
    %503 = vmatpush2.msra.mxu0 0.0
    %504 = vmatprep.subr.mxu0 0.0
    %505 = vmatpush2.msra.mxu0 0.0
    %506 = vmatprep.subr.mxu0 0.0
    %507 = vmatpush2.msra.mxu0 0.0
    %508 = vmatprep.subr.mxu0 0.0
    %509 = vmatpush2.msra.mxu0 0.0
    %510 = vmatprep.subr.mxu0 0.0
    %511 = vmatpush2.msra.mxu0 0.0
    %512 = vmatprep.subr.mxu0 0.0
    %513 = vmatpush2.msra.mxu0 0.0
    %514 = vmatprep.subr.mxu0 0.0
    %515 = vmatpush2.msra.mxu0 0.0
    %516 = vmatprep.subr.mxu0 0.0
    %517 = vmatpush2.msra.mxu0 0.0
    %518 = vmatprep.subr.mxu0 0.0
    %519 = vmatpush2.msra.mxu0 0.0
    %520 = vmatprep.subr.mxu0 0.0
    %521 = vmatpush2.msra.mxu0 0.0
    %522 = vmatprep.subr.mxu0 0.0
    %523 = vmatpush2.msra.mxu0 0.0
    %524 = vmatprep.subr.mxu0 0.0
    %525 = vmatpush2.msra.mxu0 0.0
    %526 = vmatprep.mubr.f32.mxu0 0.0
    %v527 = vand.u32 %v46, 4294901760
    %528 = vmatmul.mubr.f32.gmra.mxu0 %v527
    %v529 = vpop.f32.mrf.mxu0
    %v530 = vadd.f32 %v455, %v529
    %v531 = vpop.f32.mrf.mxu0
    %532 = vdwg.mxu0
    %v533 = vmul.f32 %v530, 0.5
    %v534 = vmul.f32 %v530, 0.70710677
    %v535 = verf.f32.pop %v534
    %v536 = vadd.f32 %v535, 1.0
    %v537 = vmul.f32 %v533, %v536
    %s538 = scalar_lea.vmem [#allocation5], 40
    %v539 = vld [vmem:[%s538] sm:$0xff]
    %v540 = vld [vmem:[%s538 + $0x8] sm:$0xff]
    %v541 = vld [vmem:[%s538 + $0x10] sm:$0xff]
    %v542 = vld [vmem:[%s538 + $0x18] sm:$0xff]
    %v543 = vld [vmem:[%s538 + $0x20] sm:$0xff]
    %v545 = vsel %vm44, %v537, 0
    %547 = vmatprep.subr.mxu0 0.0
    %548 = vmatpush1.msra.mxu0 0.0
    %549 = vmatprep.subr.mxu0 0.0
    %550 = vmatpush1.msra.mxu0 0.0
    %551 = vmatprep.subr.mxu0 0.0
    %552 = vmatpush1.msra.mxu0 0.0
    %553 = vmatprep.subr.mxu0 0.0
    %554 = vmatpush1.msra.mxu0 0.0
    %555 = vmatprep.subr.mxu0 0.0
    %556 = vmatpush1.msra.mxu0 0.0
    %557 = vmatprep.subr.mxu0 0.0
    %558 = vmatpush1.msra.mxu0 0.0
    %559 = vmatprep.subr.mxu0 0.0
    %560 = vmatpush1.msra.mxu0 0.0
    %561 = vmatprep.subr.mxu0 0.0
    %562 = vmatpush1.msra.mxu0 0.0
    %563 = vmatprep.subr.mxu0 0.0
    %564 = vmatpush1.msra.mxu0 0.0
    %565 = vmatprep.subr.mxu0 0.0
    %566 = vmatpush1.msra.mxu0 0.0
    %567 = vmatprep.subr.mxu0 0.0
    %568 = vmatpush1.msra.mxu0 0.0
    %569 = vmatprep.subr.mxu0 0.0
    %570 = vmatpush1.msra.mxu0 0.0
    %571 = vmatprep.subr.mxu0 0.0
    %v572 = vand.u32 %v542, 4294901760
    %573 = vmatpush1.msra.mxu0 %v572
    %574 = vmatprep.subr.mxu0 0.0
    %v575 = vand.u32 %v541, 4294901760
    %576 = vmatpush1.msra.mxu0 %v575
    %577 = vmatprep.subr.mxu0 0.0
    %v578 = vand.u32 %v540, 4294901760
    %579 = vmatpush1.msra.mxu0 %v578
    %580 = vmatprep.subr.mxu0 0.0
    %v581 = vand.u32 %v539, 4294901760
    %582 = vmatpush1.msra.mxu0 %v581
    %583 = vmatprep.subr.mxu0 0.0
    %584 = vmatpush2.msra.mxu0 0.0
    %585 = vmatprep.subr.mxu0 0.0
    %586 = vmatpush2.msra.mxu0 0.0
    %587 = vmatprep.subr.mxu0 0.0
    %588 = vmatpush2.msra.mxu0 0.0
    %589 = vmatprep.subr.mxu0 0.0
    %590 = vmatpush2.msra.mxu0 0.0
    %591 = vmatprep.subr.mxu0 0.0
    %592 = vmatpush2.msra.mxu0 0.0
    %593 = vmatprep.subr.mxu0 0.0
    %594 = vmatpush2.msra.mxu0 0.0
    %595 = vmatprep.subr.mxu0 0.0
    %596 = vmatpush2.msra.mxu0 0.0
    %597 = vmatprep.subr.mxu0 0.0
    %598 = vmatpush2.msra.mxu0 0.0
    %599 = vmatprep.subr.mxu0 0.0
    %600 = vmatpush2.msra.mxu0 0.0
    %601 = vmatprep.subr.mxu0 0.0
    %602 = vmatpush2.msra.mxu0 0.0
    %603 = vmatprep.subr.mxu0 0.0
    %604 = vmatpush2.msra.mxu0 0.0
    %605 = vmatprep.subr.mxu0 0.0
    %606 = vmatpush2.msra.mxu0 0.0
    %607 = vmatprep.subr.mxu0 0.0
    %608 = vmatpush2.msra.mxu0 0.0
    %609 = vmatprep.subr.mxu0 0.0
    %610 = vmatpush2.msra.mxu0 0.0
    %611 = vmatprep.subr.mxu0 0.0
    %612 = vmatpush2.msra.mxu0 0.0
    %613 = vmatprep.subr.mxu0 0.0
    %614 = vmatpush2.msra.mxu0 0.0
    %615 = vmatprep.mubr.f32.mxu0 0.0
    %v616 = vand.u32 %v545, 4294901760
    %v617 = vsub.f32 %v545, %v616
    %v618 = vand.u32 %v617, 4294901760
    %v619 = vsub.f32 %v617, %v618
    %v620 = vand.u32 %v619, 4294901760
    %621 = vmatmul.mubr.f32.gmra.mxu0 %v620
    %v622 = vpop.f32.mrf.mxu0
    %v623 = vadd.f32 %v543, %v622
    %v624 = vpop.f32.mrf.mxu0
    %625 = vdwg.mxu0
    %626 = vmatprep.subr.mxu0 0.0
    %627 = vmatpush1.msra.mxu0 0.0
    %628 = vmatprep.subr.mxu0 0.0
    %629 = vmatpush1.msra.mxu0 0.0
    %630 = vmatprep.subr.mxu0 0.0
    %631 = vmatpush1.msra.mxu0 0.0
    %632 = vmatprep.subr.mxu0 0.0
    %633 = vmatpush1.msra.mxu0 0.0
    %634 = vmatprep.subr.mxu0 0.0
    %635 = vmatpush1.msra.mxu0 0.0
    %636 = vmatprep.subr.mxu0 0.0
    %637 = vmatpush1.msra.mxu0 0.0
    %638 = vmatprep.subr.mxu0 0.0
    %639 = vmatpush1.msra.mxu0 0.0
    %640 = vmatprep.subr.mxu0 0.0
    %641 = vmatpush1.msra.mxu0 0.0
    %642 = vmatprep.subr.mxu0 0.0
    %643 = vmatpush1.msra.mxu0 0.0
    %644 = vmatprep.subr.mxu0 0.0
    %645 = vmatpush1.msra.mxu0 0.0
    %646 = vmatprep.subr.mxu0 0.0
    %647 = vmatpush1.msra.mxu0 0.0
    %648 = vmatprep.subr.mxu0 0.0
    %649 = vmatpush1.msra.mxu0 0.0
    %650 = vmatprep.subr.mxu0 0.0
    %v651 = vand.u32 %v542, 4294901760
    %v652 = vsub.f32 %v542, %v651
    %v653 = vand.u32 %v652, 4294901760
    %v654 = vsub.f32 %v652, %v653
    %v655 = vand.u32 %v654, 4294901760
    %656 = vmatpush1.msra.mxu0 %v655
    %657 = vmatprep.subr.mxu0 0.0
    %v658 = vand.u32 %v541, 4294901760
    %v659 = vsub.f32 %v541, %v658
    %v660 = vand.u32 %v659, 4294901760
    %v661 = vsub.f32 %v659, %v660
    %v662 = vand.u32 %v661, 4294901760
    %663 = vmatpush1.msra.mxu0 %v662
    %664 = vmatprep.subr.mxu0 0.0
    %v665 = vand.u32 %v540, 4294901760
    %v666 = vsub.f32 %v540, %v665
    %v667 = vand.u32 %v666, 4294901760
    %v668 = vsub.f32 %v666, %v667
    %v669 = vand.u32 %v668, 4294901760
    %670 = vmatpush1.msra.mxu0 %v669
    %671 = vmatprep.subr.mxu0 0.0
    %v672 = vand.u32 %v539, 4294901760
    %v673 = vsub.f32 %v539, %v672
    %v674 = vand.u32 %v673, 4294901760
    %v675 = vsub.f32 %v673, %v674
    %v676 = vand.u32 %v675, 4294901760
    %677 = vmatpush1.msra.mxu0 %v676
    %678 = vmatprep.subr.mxu0 0.0
    %679 = vmatpush2.msra.mxu0 0.0
    %680 = vmatprep.subr.mxu0 0.0
    %681 = vmatpush2.msra.mxu0 0.0
    %682 = vmatprep.subr.mxu0 0.0
    %683 = vmatpush2.msra.mxu0 0.0
    %684 = vmatprep.subr.mxu0 0.0
    %685 = vmatpush2.msra.mxu0 0.0
    %686 = vmatprep.subr.mxu0 0.0
    %687 = vmatpush2.msra.mxu0 0.0
    %688 = vmatprep.subr.mxu0 0.0
    %689 = vmatpush2.msra.mxu0 0.0
    %690 = vmatprep.subr.mxu0 0.0
    %691 = vmatpush2.msra.mxu0 0.0
    %692 = vmatprep.subr.mxu0 0.0
    %693 = vmatpush2.msra.mxu0 0.0
    %694 = vmatprep.subr.mxu0 0.0
    %695 = vmatpush2.msra.mxu0 0.0
    %696 = vmatprep.subr.mxu0 0.0
    %697 = vmatpush2.msra.mxu0 0.0
    %698 = vmatprep.subr.mxu0 0.0
    %699 = vmatpush2.msra.mxu0 0.0
    %700 = vmatprep.subr.mxu0 0.0
    %701 = vmatpush2.msra.mxu0 0.0
    %702 = vmatprep.subr.mxu0 0.0
    %703 = vmatpush2.msra.mxu0 0.0
    %704 = vmatprep.subr.mxu0 0.0
    %705 = vmatpush2.msra.mxu0 0.0
    %706 = vmatprep.subr.mxu0 0.0
    %707 = vmatpush2.msra.mxu0 0.0
    %708 = vmatprep.subr.mxu0 0.0
    %709 = vmatpush2.msra.mxu0 0.0
    %710 = vmatprep.mubr.f32.mxu0 0.0
    %v711 = vand.u32 %v545, 4294901760
    %712 = vmatmul.mubr.f32.gmra.mxu0 %v711
    %v713 = vpop.f32.mrf.mxu0
    %v714 = vadd.f32 %v623, %v713
    %v715 = vpop.f32.mrf.mxu0
    %716 = vdwg.mxu0
    %717 = vmatprep.subr.mxu0 0.0
    %718 = vmatpush1.msra.mxu0 0.0
    %719 = vmatprep.subr.mxu0 0.0
    %720 = vmatpush1.msra.mxu0 0.0
    %721 = vmatprep.subr.mxu0 0.0
    %722 = vmatpush1.msra.mxu0 0.0
    %723 = vmatprep.subr.mxu0 0.0
    %724 = vmatpush1.msra.mxu0 0.0
    %725 = vmatprep.subr.mxu0 0.0
    %726 = vmatpush1.msra.mxu0 0.0
    %727 = vmatprep.subr.mxu0 0.0
    %728 = vmatpush1.msra.mxu0 0.0
    %729 = vmatprep.subr.mxu0 0.0
    %730 = vmatpush1.msra.mxu0 0.0
    %731 = vmatprep.subr.mxu0 0.0
    %732 = vmatpush1.msra.mxu0 0.0
    %733 = vmatprep.subr.mxu0 0.0
    %734 = vmatpush1.msra.mxu0 0.0
    %735 = vmatprep.subr.mxu0 0.0
    %736 = vmatpush1.msra.mxu0 0.0
    %737 = vmatprep.subr.mxu0 0.0
    %738 = vmatpush1.msra.mxu0 0.0
    %739 = vmatprep.subr.mxu0 0.0
    %740 = vmatpush1.msra.mxu0 0.0
    %741 = vmatprep.subr.mxu0 0.0
    %v742 = vand.u32 %v542, 4294901760
    %v743 = vsub.f32 %v542, %v742
    %744 = vmatpush1.msra.mxu0 %v743
    %745 = vmatprep.subr.mxu0 0.0
    %v746 = vand.u32 %v541, 4294901760
    %v747 = vsub.f32 %v541, %v746
    %748 = vmatpush1.msra.mxu0 %v747
    %749 = vmatprep.subr.mxu0 0.0
    %v750 = vand.u32 %v540, 4294901760
    %v751 = vsub.f32 %v540, %v750
    %752 = vmatpush1.msra.mxu0 %v751
    %753 = vmatprep.subr.mxu0 0.0
    %v754 = vand.u32 %v539, 4294901760
    %v755 = vsub.f32 %v539, %v754
    %756 = vmatpush1.msra.mxu0 %v755
    %757 = vmatprep.subr.mxu0 0.0
    %758 = vmatpush2.msra.mxu0 0.0
    %759 = vmatprep.subr.mxu0 0.0
    %760 = vmatpush2.msra.mxu0 0.0
    %761 = vmatprep.subr.mxu0 0.0
    %762 = vmatpush2.msra.mxu0 0.0
    %763 = vmatprep.subr.mxu0 0.0
    %764 = vmatpush2.msra.mxu0 0.0
    %765 = vmatprep.subr.mxu0 0.0
    %766 = vmatpush2.msra.mxu0 0.0
    %767 = vmatprep.subr.mxu0 0.0
    %768 = vmatpush2.msra.mxu0 0.0
    %769 = vmatprep.subr.mxu0 0.0
    %770 = vmatpush2.msra.mxu0 0.0
    %771 = vmatprep.subr.mxu0 0.0
    %772 = vmatpush2.msra.mxu0 0.0
    %773 = vmatprep.subr.mxu0 0.0
    %774 = vmatpush2.msra.mxu0 0.0
    %775 = vmatprep.subr.mxu0 0.0
    %776 = vmatpush2.msra.mxu0 0.0
    %777 = vmatprep.subr.mxu0 0.0
    %778 = vmatpush2.msra.mxu0 0.0
    %779 = vmatprep.subr.mxu0 0.0
    %780 = vmatpush2.msra.mxu0 0.0
    %781 = vmatprep.subr.mxu0 0.0
    %782 = vmatpush2.msra.mxu0 0.0
    %783 = vmatprep.subr.mxu0 0.0
    %784 = vmatpush2.msra.mxu0 0.0
    %785 = vmatprep.subr.mxu0 0.0
    %786 = vmatpush2.msra.mxu0 0.0
    %787 = vmatprep.subr.mxu0 0.0
    %788 = vmatpush2.msra.mxu0 0.0
    %789 = vmatprep.mubr.f32.mxu0 0.0
    %v790 = vand.u32 %v545, 4294901760
    %v791 = vsub.f32 %v545, %v790
    %792 = vmatmul.mubr.f32.gmra.mxu0 %v791
    %v793 = vpop.f32.mrf.mxu0
    %v794 = vadd.f32 %v714, %v793
    %v795 = vpop.f32.mrf.mxu0
    %796 = vdwg.mxu0
    %797 = vmatprep.subr.mxu0 0.0
    %798 = vmatpush1.msra.mxu0 0.0
    %799 = vmatprep.subr.mxu0 0.0
    %800 = vmatpush1.msra.mxu0 0.0
    %801 = vmatprep.subr.mxu0 0.0
    %802 = vmatpush1.msra.mxu0 0.0
    %803 = vmatprep.subr.mxu0 0.0
    %804 = vmatpush1.msra.mxu0 0.0
    %805 = vmatprep.subr.mxu0 0.0
    %806 = vmatpush1.msra.mxu0 0.0
    %807 = vmatprep.subr.mxu0 0.0
    %808 = vmatpush1.msra.mxu0 0.0
    %809 = vmatprep.subr.mxu0 0.0
    %810 = vmatpush1.msra.mxu0 0.0
    %811 = vmatprep.subr.mxu0 0.0
    %812 = vmatpush1.msra.mxu0 0.0
    %813 = vmatprep.subr.mxu0 0.0
    %814 = vmatpush1.msra.mxu0 0.0
    %815 = vmatprep.subr.mxu0 0.0
    %816 = vmatpush1.msra.mxu0 0.0
    %817 = vmatprep.subr.mxu0 0.0
    %818 = vmatpush1.msra.mxu0 0.0
    %819 = vmatprep.subr.mxu0 0.0
    %820 = vmatpush1.msra.mxu0 0.0
    %821 = vmatprep.subr.mxu0 0.0
    %v822 = vand.u32 %v542, 4294901760
    %823 = vmatpush1.msra.mxu0 %v822
    %824 = vmatprep.subr.mxu0 0.0
    %v825 = vand.u32 %v541, 4294901760
    %826 = vmatpush1.msra.mxu0 %v825
    %827 = vmatprep.subr.mxu0 0.0
    %v828 = vand.u32 %v540, 4294901760
    %829 = vmatpush1.msra.mxu0 %v828
    %830 = vmatprep.subr.mxu0 0.0
    %v831 = vand.u32 %v539, 4294901760
    %832 = vmatpush1.msra.mxu0 %v831
    %833 = vmatprep.subr.mxu0 0.0
    %834 = vmatpush2.msra.mxu0 0.0
    %835 = vmatprep.subr.mxu0 0.0
    %836 = vmatpush2.msra.mxu0 0.0
    %837 = vmatprep.subr.mxu0 0.0
    %838 = vmatpush2.msra.mxu0 0.0
    %839 = vmatprep.subr.mxu0 0.0
    %840 = vmatpush2.msra.mxu0 0.0
    %841 = vmatprep.subr.mxu0 0.0
    %842 = vmatpush2.msra.mxu0 0.0
    %843 = vmatprep.subr.mxu0 0.0
    %844 = vmatpush2.msra.mxu0 0.0
    %845 = vmatprep.subr.mxu0 0.0
    %846 = vmatpush2.msra.mxu0 0.0
    %847 = vmatprep.subr.mxu0 0.0
    %848 = vmatpush2.msra.mxu0 0.0
    %849 = vmatprep.subr.mxu0 0.0
    %850 = vmatpush2.msra.mxu0 0.0
    %851 = vmatprep.subr.mxu0 0.0
    %852 = vmatpush2.msra.mxu0 0.0
    %853 = vmatprep.subr.mxu0 0.0
    %854 = vmatpush2.msra.mxu0 0.0
    %855 = vmatprep.subr.mxu0 0.0
    %856 = vmatpush2.msra.mxu0 0.0
    %857 = vmatprep.subr.mxu0 0.0
    %858 = vmatpush2.msra.mxu0 0.0
    %859 = vmatprep.subr.mxu0 0.0
    %860 = vmatpush2.msra.mxu0 0.0
    %861 = vmatprep.subr.mxu0 0.0
    %862 = vmatpush2.msra.mxu0 0.0
    %863 = vmatprep.subr.mxu0 0.0
    %864 = vmatpush2.msra.mxu0 0.0
    %865 = vmatprep.mubr.f32.mxu0 0.0
    %v866 = vand.u32 %v545, 4294901760
    %v867 = vsub.f32 %v545, %v866
    %v868 = vand.u32 %v867, 4294901760
    %869 = vmatmul.mubr.f32.gmra.mxu0 %v868
    %v870 = vpop.f32.mrf.mxu0
    %v871 = vadd.f32 %v794, %v870
    %v872 = vpop.f32.mrf.mxu0
    %873 = vdwg.mxu0
    %874 = vmatprep.subr.mxu0 0.0
    %875 = vmatpush1.msra.mxu0 0.0
    %876 = vmatprep.subr.mxu0 0.0
    %877 = vmatpush1.msra.mxu0 0.0
    %878 = vmatprep.subr.mxu0 0.0
    %879 = vmatpush1.msra.mxu0 0.0
    %880 = vmatprep.subr.mxu0 0.0
    %881 = vmatpush1.msra.mxu0 0.0
    %882 = vmatprep.subr.mxu0 0.0
    %883 = vmatpush1.msra.mxu0 0.0
    %884 = vmatprep.subr.mxu0 0.0
    %885 = vmatpush1.msra.mxu0 0.0
    %886 = vmatprep.subr.mxu0 0.0
    %887 = vmatpush1.msra.mxu0 0.0
    %888 = vmatprep.subr.mxu0 0.0
    %889 = vmatpush1.msra.mxu0 0.0
    %890 = vmatprep.subr.mxu0 0.0
    %891 = vmatpush1.msra.mxu0 0.0
    %892 = vmatprep.subr.mxu0 0.0
    %893 = vmatpush1.msra.mxu0 0.0
    %894 = vmatprep.subr.mxu0 0.0
    %895 = vmatpush1.msra.mxu0 0.0
    %896 = vmatprep.subr.mxu0 0.0
    %897 = vmatpush1.msra.mxu0 0.0
    %898 = vmatprep.subr.mxu0 0.0
    %v899 = vand.u32 %v542, 4294901760
    %v900 = vsub.f32 %v542, %v899
    %v901 = vand.u32 %v900, 4294901760
    %902 = vmatpush1.msra.mxu0 %v901
    %903 = vmatprep.subr.mxu0 0.0
    %v904 = vand.u32 %v541, 4294901760
    %v905 = vsub.f32 %v541, %v904
    %v906 = vand.u32 %v905, 4294901760
    %907 = vmatpush1.msra.mxu0 %v906
    %908 = vmatprep.subr.mxu0 0.0
    %v909 = vand.u32 %v540, 4294901760
    %v910 = vsub.f32 %v540, %v909
    %v911 = vand.u32 %v910, 4294901760
    %912 = vmatpush1.msra.mxu0 %v911
    %913 = vmatprep.subr.mxu0 0.0
    %v914 = vand.u32 %v539, 4294901760
    %v915 = vsub.f32 %v539, %v914
    %v916 = vand.u32 %v915, 4294901760
    %917 = vmatpush1.msra.mxu0 %v916
    %918 = vmatprep.subr.mxu0 0.0
    %919 = vmatpush2.msra.mxu0 0.0
    %920 = vmatprep.subr.mxu0 0.0
    %921 = vmatpush2.msra.mxu0 0.0
    %922 = vmatprep.subr.mxu0 0.0
    %923 = vmatpush2.msra.mxu0 0.0
    %924 = vmatprep.subr.mxu0 0.0
    %925 = vmatpush2.msra.mxu0 0.0
    %926 = vmatprep.subr.mxu0 0.0
    %927 = vmatpush2.msra.mxu0 0.0
    %928 = vmatprep.subr.mxu0 0.0
    %929 = vmatpush2.msra.mxu0 0.0
    %930 = vmatprep.subr.mxu0 0.0
    %931 = vmatpush2.msra.mxu0 0.0
    %932 = vmatprep.subr.mxu0 0.0
    %933 = vmatpush2.msra.mxu0 0.0
    %934 = vmatprep.subr.mxu0 0.0
    %935 = vmatpush2.msra.mxu0 0.0
    %936 = vmatprep.subr.mxu0 0.0
    %937 = vmatpush2.msra.mxu0 0.0
    %938 = vmatprep.subr.mxu0 0.0
    %939 = vmatpush2.msra.mxu0 0.0
    %940 = vmatprep.subr.mxu0 0.0
    %941 = vmatpush2.msra.mxu0 0.0
    %942 = vmatprep.subr.mxu0 0.0
    %943 = vmatpush2.msra.mxu0 0.0
    %944 = vmatprep.subr.mxu0 0.0
    %945 = vmatpush2.msra.mxu0 0.0
    %946 = vmatprep.subr.mxu0 0.0
    %947 = vmatpush2.msra.mxu0 0.0
    %948 = vmatprep.subr.mxu0 0.0
    %949 = vmatpush2.msra.mxu0 0.0
    %950 = vmatprep.mubr.f32.mxu0 0.0
    %v951 = vand.u32 %v545, 4294901760
    %952 = vmatmul.mubr.f32.gmra.mxu0 %v951
    %v953 = vpop.f32.mrf.mxu0
    %v954 = vadd.f32 %v871, %v953
    %v955 = vpop.f32.mrf.mxu0
    %956 = vdwg.mxu0
    %957 = vmatprep.subr.mxu0 0.0
    %958 = vmatpush1.msra.mxu0 0.0
    %959 = vmatprep.subr.mxu0 0.0
    %960 = vmatpush1.msra.mxu0 0.0
    %961 = vmatprep.subr.mxu0 0.0
    %962 = vmatpush1.msra.mxu0 0.0
    %963 = vmatprep.subr.mxu0 0.0
    %964 = vmatpush1.msra.mxu0 0.0
    %965 = vmatprep.subr.mxu0 0.0
    %966 = vmatpush1.msra.mxu0 0.0
    %967 = vmatprep.subr.mxu0 0.0
    %968 = vmatpush1.msra.mxu0 0.0
    %969 = vmatprep.subr.mxu0 0.0
    %970 = vmatpush1.msra.mxu0 0.0
    %971 = vmatprep.subr.mxu0 0.0
    %972 = vmatpush1.msra.mxu0 0.0
    %973 = vmatprep.subr.mxu0 0.0
    %974 = vmatpush1.msra.mxu0 0.0
    %975 = vmatprep.subr.mxu0 0.0
    %976 = vmatpush1.msra.mxu0 0.0
    %977 = vmatprep.subr.mxu0 0.0
    %978 = vmatpush1.msra.mxu0 0.0
    %979 = vmatprep.subr.mxu0 0.0
    %980 = vmatpush1.msra.mxu0 0.0
    %981 = vmatprep.subr.mxu0 0.0
    %v982 = vand.u32 %v542, 4294901760
    %983 = vmatpush1.msra.mxu0 %v982
    %984 = vmatprep.subr.mxu0 0.0
    %v985 = vand.u32 %v541, 4294901760
    %986 = vmatpush1.msra.mxu0 %v985
    %987 = vmatprep.subr.mxu0 0.0
    %v988 = vand.u32 %v540, 4294901760
    %989 = vmatpush1.msra.mxu0 %v988
    %990 = vmatprep.subr.mxu0 0.0
    %v991 = vand.u32 %v539, 4294901760
    %992 = vmatpush1.msra.mxu0 %v991
    %993 = vmatprep.subr.mxu0 0.0
    %994 = vmatpush2.msra.mxu0 0.0
    %995 = vmatprep.subr.mxu0 0.0
    %996 = vmatpush2.msra.mxu0 0.0
    %997 = vmatprep.subr.mxu0 0.0
    %998 = vmatpush2.msra.mxu0 0.0
    %999 = vmatprep.subr.mxu0 0.0
    %1000 = vmatpush2.msra.mxu0 0.0
    %1001 = vmatprep.subr.mxu0 0.0
    %1002 = vmatpush2.msra.mxu0 0.0
    %1003 = vmatprep.subr.mxu0 0.0
    %1004 = vmatpush2.msra.mxu0 0.0
    %1005 = vmatprep.subr.mxu0 0.0
    %1006 = vmatpush2.msra.mxu0 0.0
    %1007 = vmatprep.subr.mxu0 0.0
    %1008 = vmatpush2.msra.mxu0 0.0
    %1009 = vmatprep.subr.mxu0 0.0
    %1010 = vmatpush2.msra.mxu0 0.0
    %1011 = vmatprep.subr.mxu0 0.0
    %1012 = vmatpush2.msra.mxu0 0.0
    %1013 = vmatprep.subr.mxu0 0.0
    %1014 = vmatpush2.msra.mxu0 0.0
    %1015 = vmatprep.subr.mxu0 0.0
    %1016 = vmatpush2.msra.mxu0 0.0
    %1017 = vmatprep.subr.mxu0 0.0
    %1018 = vmatpush2.msra.mxu0 0.0
    %1019 = vmatprep.subr.mxu0 0.0
    %1020 = vmatpush2.msra.mxu0 0.0
    %1021 = vmatprep.subr.mxu0 0.0
    %1022 = vmatpush2.msra.mxu0 0.0
    %1023 = vmatprep.subr.mxu0 0.0
    %1024 = vmatpush2.msra.mxu0 0.0
    %1025 = vmatprep.mubr.f32.mxu0 0.0
    %v1026 = vand.u32 %v545, 4294901760
    %1027 = vmatmul.mubr.f32.gmra.mxu0 %v1026
    %v1028 = vpop.f32.mrf.mxu0
    %v1029 = vadd.f32 %v954, %v1028
    %v1030 = vpop.f32.mrf.mxu0
    %1031 = vdwg.mxu0
    %v1032 = vmul.f32 %v1029, 0.5
    %v1033 = vmul.f32 %v1029, 0.70710677
    %v1034 = verf.f32.pop %v1033
    %v1035 = vadd.f32 %v1034, 1.0
    %v1036 = vmul.f32 %v1032, %v1035
    %s1037 = scalar_lea.vmem [#allocation5], 80
    %v1038 = vld [vmem:[%s1037] sm:$0xff]
    %v1039 = vld [vmem:[%s1037 + $0x8] sm:$0xff]
    %v1040 = vld [vmem:[%s1037 + $0x10] sm:$0xff]
    %v1041 = vld [vmem:[%s1037 + $0x18] sm:$0xff]
    %v1042 = vld [vmem:[%s1037 + $0x20] sm:$0xff]
    %v1044 = vsel %vm44, %v1036, 0
    %1046 = vmatprep.subr.mxu0 0.0
    %1047 = vmatpush1.msra.mxu0 0.0
    %1048 = vmatprep.subr.mxu0 0.0
    %1049 = vmatpush1.msra.mxu0 0.0
    %1050 = vmatprep.subr.mxu0 0.0
    %1051 = vmatpush1.msra.mxu0 0.0
    %1052 = vmatprep.subr.mxu0 0.0
    %1053 = vmatpush1.msra.mxu0 0.0
    %1054 = vmatprep.subr.mxu0 0.0
    %1055 = vmatpush1.msra.mxu0 0.0
    %1056 = vmatprep.subr.mxu0 0.0
    %1057 = vmatpush1.msra.mxu0 0.0
    %1058 = vmatprep.subr.mxu0 0.0
    %1059 = vmatpush1.msra.mxu0 0.0
    %1060 = vmatprep.subr.mxu0 0.0
    %1061 = vmatpush1.msra.mxu0 0.0
    %1062 = vmatprep.subr.mxu0 0.0
    %1063 = vmatpush1.msra.mxu0 0.0
    %1064 = vmatprep.subr.mxu0 0.0
    %1065 = vmatpush1.msra.mxu0 0.0
    %1066 = vmatprep.subr.mxu0 0.0
    %1067 = vmatpush1.msra.mxu0 0.0
    %1068 = vmatprep.subr.mxu0 0.0
    %1069 = vmatpush1.msra.mxu0 0.0
    %1070 = vmatprep.subr.mxu0 0.0
    %v1071 = vand.u32 %v1041, 4294901760
    %1072 = vmatpush1.msra.mxu0 %v1071
    %1073 = vmatprep.subr.mxu0 0.0
    %v1074 = vand.u32 %v1040, 4294901760
    %1075 = vmatpush1.msra.mxu0 %v1074
    %1076 = vmatprep.subr.mxu0 0.0
    %v1077 = vand.u32 %v1039, 4294901760
    %1078 = vmatpush1.msra.mxu0 %v1077
    %1079 = vmatprep.subr.mxu0 0.0
    %v1080 = vand.u32 %v1038, 4294901760
    %1081 = vmatpush1.msra.mxu0 %v1080
    %1082 = vmatprep.subr.mxu0 0.0
    %1083 = vmatpush2.msra.mxu0 0.0
    %1084 = vmatprep.subr.mxu0 0.0
    %1085 = vmatpush2.msra.mxu0 0.0
    %1086 = vmatprep.subr.mxu0 0.0
    %1087 = vmatpush2.msra.mxu0 0.0
    %1088 = vmatprep.subr.mxu0 0.0
    %1089 = vmatpush2.msra.mxu0 0.0
    %1090 = vmatprep.subr.mxu0 0.0
    %1091 = vmatpush2.msra.mxu0 0.0
    %1092 = vmatprep.subr.mxu0 0.0
    %1093 = vmatpush2.msra.mxu0 0.0
    %1094 = vmatprep.subr.mxu0 0.0
    %1095 = vmatpush2.msra.mxu0 0.0
    %1096 = vmatprep.subr.mxu0 0.0
    %1097 = vmatpush2.msra.mxu0 0.0
    %1098 = vmatprep.subr.mxu0 0.0
    %1099 = vmatpush2.msra.mxu0 0.0
    %1100 = vmatprep.subr.mxu0 0.0
    %1101 = vmatpush2.msra.mxu0 0.0
    %1102 = vmatprep.subr.mxu0 0.0
    %1103 = vmatpush2.msra.mxu0 0.0
    %1104 = vmatprep.subr.mxu0 0.0
    %1105 = vmatpush2.msra.mxu0 0.0
    %1106 = vmatprep.subr.mxu0 0.0
    %1107 = vmatpush2.msra.mxu0 0.0
    %1108 = vmatprep.subr.mxu0 0.0
    %1109 = vmatpush2.msra.mxu0 0.0
    %1110 = vmatprep.subr.mxu0 0.0
    %1111 = vmatpush2.msra.mxu0 0.0
    %1112 = vmatprep.subr.mxu0 0.0
    %1113 = vmatpush2.msra.mxu0 0.0
    %1114 = vmatprep.mubr.f32.mxu0 0.0
    %v1115 = vand.u32 %v1044, 4294901760
    %v1116 = vsub.f32 %v1044, %v1115
    %v1117 = vand.u32 %v1116, 4294901760
    %v1118 = vsub.f32 %v1116, %v1117
    %v1119 = vand.u32 %v1118, 4294901760
    %1120 = vmatmul.mubr.f32.gmra.mxu0 %v1119
    %v1121 = vpop.f32.mrf.mxu0
    %v1122 = vadd.f32 %v1042, %v1121
    %v1123 = vpop.f32.mrf.mxu0
    %1124 = vdwg.mxu0
    %1125 = vmatprep.subr.mxu0 0.0
    %1126 = vmatpush1.msra.mxu0 0.0
    %1127 = vmatprep.subr.mxu0 0.0
    %1128 = vmatpush1.msra.mxu0 0.0
    %1129 = vmatprep.subr.mxu0 0.0
    %1130 = vmatpush1.msra.mxu0 0.0
    %1131 = vmatprep.subr.mxu0 0.0
    %1132 = vmatpush1.msra.mxu0 0.0
    %1133 = vmatprep.subr.mxu0 0.0
    %1134 = vmatpush1.msra.mxu0 0.0
    %1135 = vmatprep.subr.mxu0 0.0
    %1136 = vmatpush1.msra.mxu0 0.0
    %1137 = vmatprep.subr.mxu0 0.0
    %1138 = vmatpush1.msra.mxu0 0.0
    %1139 = vmatprep.subr.mxu0 0.0
    %1140 = vmatpush1.msra.mxu0 0.0
    %1141 = vmatprep.subr.mxu0 0.0
    %1142 = vmatpush1.msra.mxu0 0.0
    %1143 = vmatprep.subr.mxu0 0.0
    %1144 = vmatpush1.msra.mxu0 0.0
    %1145 = vmatprep.subr.mxu0 0.0
    %1146 = vmatpush1.msra.mxu0 0.0
    %1147 = vmatprep.subr.mxu0 0.0
    %1148 = vmatpush1.msra.mxu0 0.0
    %1149 = vmatprep.subr.mxu0 0.0
    %v1150 = vand.u32 %v1041, 4294901760
    %v1151 = vsub.f32 %v1041, %v1150
    %v1152 = vand.u32 %v1151, 4294901760
    %v1153 = vsub.f32 %v1151, %v1152
    %v1154 = vand.u32 %v1153, 4294901760
    %1155 = vmatpush1.msra.mxu0 %v1154
    %1156 = vmatprep.subr.mxu0 0.0
    %v1157 = vand.u32 %v1040, 4294901760
    %v1158 = vsub.f32 %v1040, %v1157
    %v1159 = vand.u32 %v1158, 4294901760
    %v1160 = vsub.f32 %v1158, %v1159
    %v1161 = vand.u32 %v1160, 4294901760
    %1162 = vmatpush1.msra.mxu0 %v1161
    %1163 = vmatprep.subr.mxu0 0.0
    %v1164 = vand.u32 %v1039, 4294901760
    %v1165 = vsub.f32 %v1039, %v1164
    %v1166 = vand.u32 %v1165, 4294901760
    %v1167 = vsub.f32 %v1165, %v1166
    %v1168 = vand.u32 %v1167, 4294901760
    %1169 = vmatpush1.msra.mxu0 %v1168
    %1170 = vmatprep.subr.mxu0 0.0
    %v1171 = vand.u32 %v1038, 4294901760
    %v1172 = vsub.f32 %v1038, %v1171
    %v1173 = vand.u32 %v1172, 4294901760
    %v1174 = vsub.f32 %v1172, %v1173
    %v1175 = vand.u32 %v1174, 4294901760
    %1176 = vmatpush1.msra.mxu0 %v1175
    %1177 = vmatprep.subr.mxu0 0.0
    %1178 = vmatpush2.msra.mxu0 0.0
    %1179 = vmatprep.subr.mxu0 0.0
    %1180 = vmatpush2.msra.mxu0 0.0
    %1181 = vmatprep.subr.mxu0 0.0
    %1182 = vmatpush2.msra.mxu0 0.0
    %1183 = vmatprep.subr.mxu0 0.0
    %1184 = vmatpush2.msra.mxu0 0.0
    %1185 = vmatprep.subr.mxu0 0.0
    %1186 = vmatpush2.msra.mxu0 0.0
    %1187 = vmatprep.subr.mxu0 0.0
    %1188 = vmatpush2.msra.mxu0 0.0
    %1189 = vmatprep.subr.mxu0 0.0
    %1190 = vmatpush2.msra.mxu0 0.0
    %1191 = vmatprep.subr.mxu0 0.0
    %1192 = vmatpush2.msra.mxu0 0.0
    %1193 = vmatprep.subr.mxu0 0.0
    %1194 = vmatpush2.msra.mxu0 0.0
    %1195 = vmatprep.subr.mxu0 0.0
    %1196 = vmatpush2.msra.mxu0 0.0
    %1197 = vmatprep.subr.mxu0 0.0
    %1198 = vmatpush2.msra.mxu0 0.0
    %1199 = vmatprep.subr.mxu0 0.0
    %1200 = vmatpush2.msra.mxu0 0.0
    %1201 = vmatprep.subr.mxu0 0.0
    %1202 = vmatpush2.msra.mxu0 0.0
    %1203 = vmatprep.subr.mxu0 0.0
    %1204 = vmatpush2.msra.mxu0 0.0
    %1205 = vmatprep.subr.mxu0 0.0
    %1206 = vmatpush2.msra.mxu0 0.0
    %1207 = vmatprep.subr.mxu0 0.0
    %1208 = vmatpush2.msra.mxu0 0.0
    %1209 = vmatprep.mubr.f32.mxu0 0.0
    %v1210 = vand.u32 %v1044, 4294901760
    %1211 = vmatmul.mubr.f32.gmra.mxu0 %v1210
    %v1212 = vpop.f32.mrf.mxu0
    %v1213 = vadd.f32 %v1122, %v1212
    %v1214 = vpop.f32.mrf.mxu0
    %1215 = vdwg.mxu0
    %1216 = vmatprep.subr.mxu0 0.0
    %1217 = vmatpush1.msra.mxu0 0.0
    %1218 = vmatprep.subr.mxu0 0.0
    %1219 = vmatpush1.msra.mxu0 0.0
    %1220 = vmatprep.subr.mxu0 0.0
    %1221 = vmatpush1.msra.mxu0 0.0
    %1222 = vmatprep.subr.mxu0 0.0
    %1223 = vmatpush1.msra.mxu0 0.0
    %1224 = vmatprep.subr.mxu0 0.0
    %1225 = vmatpush1.msra.mxu0 0.0
    %1226 = vmatprep.subr.mxu0 0.0
    %1227 = vmatpush1.msra.mxu0 0.0
    %1228 = vmatprep.subr.mxu0 0.0
    %1229 = vmatpush1.msra.mxu0 0.0
    %1230 = vmatprep.subr.mxu0 0.0
    %1231 = vmatpush1.msra.mxu0 0.0
    %1232 = vmatprep.subr.mxu0 0.0
    %1233 = vmatpush1.msra.mxu0 0.0
    %1234 = vmatprep.subr.mxu0 0.0
    %1235 = vmatpush1.msra.mxu0 0.0
    %1236 = vmatprep.subr.mxu0 0.0
    %1237 = vmatpush1.msra.mxu0 0.0
    %1238 = vmatprep.subr.mxu0 0.0
    %1239 = vmatpush1.msra.mxu0 0.0
    %1240 = vmatprep.subr.mxu0 0.0
    %v1241 = vand.u32 %v1041, 4294901760
    %v1242 = vsub.f32 %v1041, %v1241
    %1243 = vmatpush1.msra.mxu0 %v1242
    %1244 = vmatprep.subr.mxu0 0.0
    %v1245 = vand.u32 %v1040, 4294901760
    %v1246 = vsub.f32 %v1040, %v1245
    %1247 = vmatpush1.msra.mxu0 %v1246
    %1248 = vmatprep.subr.mxu0 0.0
    %v1249 = vand.u32 %v1039, 4294901760
    %v1250 = vsub.f32 %v1039, %v1249
    %1251 = vmatpush1.msra.mxu0 %v1250
    %1252 = vmatprep.subr.mxu0 0.0
    %v1253 = vand.u32 %v1038, 4294901760
    %v1254 = vsub.f32 %v1038, %v1253
    %1255 = vmatpush1.msra.mxu0 %v1254
    %1256 = vmatprep.subr.mxu0 0.0
    %1257 = vmatpush2.msra.mxu0 0.0
    %1258 = vmatprep.subr.mxu0 0.0
    %1259 = vmatpush2.msra.mxu0 0.0
    %1260 = vmatprep.subr.mxu0 0.0
    %1261 = vmatpush2.msra.mxu0 0.0
    %1262 = vmatprep.subr.mxu0 0.0
    %1263 = vmatpush2.msra.mxu0 0.0
    %1264 = vmatprep.subr.mxu0 0.0
    %1265 = vmatpush2.msra.mxu0 0.0
    %1266 = vmatprep.subr.mxu0 0.0
    %1267 = vmatpush2.msra.mxu0 0.0
    %1268 = vmatprep.subr.mxu0 0.0
    %1269 = vmatpush2.msra.mxu0 0.0
    %1270 = vmatprep.subr.mxu0 0.0
    %1271 = vmatpush2.msra.mxu0 0.0
    %1272 = vmatprep.subr.mxu0 0.0
    %1273 = vmatpush2.msra.mxu0 0.0
    %1274 = vmatprep.subr.mxu0 0.0
    %1275 = vmatpush2.msra.mxu0 0.0
    %1276 = vmatprep.subr.mxu0 0.0
    %1277 = vmatpush2.msra.mxu0 0.0
    %1278 = vmatprep.subr.mxu0 0.0
    %1279 = vmatpush2.msra.mxu0 0.0
    %1280 = vmatprep.subr.mxu0 0.0
    %1281 = vmatpush2.msra.mxu0 0.0
    %1282 = vmatprep.subr.mxu0 0.0
    %1283 = vmatpush2.msra.mxu0 0.0
    %1284 = vmatprep.subr.mxu0 0.0
    %1285 = vmatpush2.msra.mxu0 0.0
    %1286 = vmatprep.subr.mxu0 0.0
    %1287 = vmatpush2.msra.mxu0 0.0
    %1288 = vmatprep.mubr.f32.mxu0 0.0
    %v1289 = vand.u32 %v1044, 4294901760
    %v1290 = vsub.f32 %v1044, %v1289
    %1291 = vmatmul.mubr.f32.gmra.mxu0 %v1290
    %v1292 = vpop.f32.mrf.mxu0
    %v1293 = vadd.f32 %v1213, %v1292
    %v1294 = vpop.f32.mrf.mxu0
    %1295 = vdwg.mxu0
    %1296 = vmatprep.subr.mxu0 0.0
    %1297 = vmatpush1.msra.mxu0 0.0
    %1298 = vmatprep.subr.mxu0 0.0
    %1299 = vmatpush1.msra.mxu0 0.0
    %1300 = vmatprep.subr.mxu0 0.0
    %1301 = vmatpush1.msra.mxu0 0.0
    %1302 = vmatprep.subr.mxu0 0.0
    %1303 = vmatpush1.msra.mxu0 0.0
    %1304 = vmatprep.subr.mxu0 0.0
    %1305 = vmatpush1.msra.mxu0 0.0
    %1306 = vmatprep.subr.mxu0 0.0
    %1307 = vmatpush1.msra.mxu0 0.0
    %1308 = vmatprep.subr.mxu0 0.0
    %1309 = vmatpush1.msra.mxu0 0.0
    %1310 = vmatprep.subr.mxu0 0.0
    %1311 = vmatpush1.msra.mxu0 0.0
    %1312 = vmatprep.subr.mxu0 0.0
    %1313 = vmatpush1.msra.mxu0 0.0
    %1314 = vmatprep.subr.mxu0 0.0
    %1315 = vmatpush1.msra.mxu0 0.0
    %1316 = vmatprep.subr.mxu0 0.0
    %1317 = vmatpush1.msra.mxu0 0.0
    %1318 = vmatprep.subr.mxu0 0.0
    %1319 = vmatpush1.msra.mxu0 0.0
    %1320 = vmatprep.subr.mxu0 0.0
    %v1321 = vand.u32 %v1041, 4294901760
    %1322 = vmatpush1.msra.mxu0 %v1321
    %1323 = vmatprep.subr.mxu0 0.0
    %v1324 = vand.u32 %v1040, 4294901760
    %1325 = vmatpush1.msra.mxu0 %v1324
    %1326 = vmatprep.subr.mxu0 0.0
    %v1327 = vand.u32 %v1039, 4294901760
    %1328 = vmatpush1.msra.mxu0 %v1327
    %1329 = vmatprep.subr.mxu0 0.0
    %v1330 = vand.u32 %v1038, 4294901760
    %1331 = vmatpush1.msra.mxu0 %v1330
    %1332 = vmatprep.subr.mxu0 0.0
    %1333 = vmatpush2.msra.mxu0 0.0
    %1334 = vmatprep.subr.mxu0 0.0
    %1335 = vmatpush2.msra.mxu0 0.0
    %1336 = vmatprep.subr.mxu0 0.0
    %1337 = vmatpush2.msra.mxu0 0.0
    %1338 = vmatprep.subr.mxu0 0.0
    %1339 = vmatpush2.msra.mxu0 0.0
    %1340 = vmatprep.subr.mxu0 0.0
    %1341 = vmatpush2.msra.mxu0 0.0
    %1342 = vmatprep.subr.mxu0 0.0
    %1343 = vmatpush2.msra.mxu0 0.0
    %1344 = vmatprep.subr.mxu0 0.0
    %1345 = vmatpush2.msra.mxu0 0.0
    %1346 = vmatprep.subr.mxu0 0.0
    %1347 = vmatpush2.msra.mxu0 0.0
    %1348 = vmatprep.subr.mxu0 0.0
    %1349 = vmatpush2.msra.mxu0 0.0
    %1350 = vmatprep.subr.mxu0 0.0
    %1351 = vmatpush2.msra.mxu0 0.0
    %1352 = vmatprep.subr.mxu0 0.0
    %1353 = vmatpush2.msra.mxu0 0.0
    %1354 = vmatprep.subr.mxu0 0.0
    %1355 = vmatpush2.msra.mxu0 0.0
    %1356 = vmatprep.subr.mxu0 0.0
    %1357 = vmatpush2.msra.mxu0 0.0
    %1358 = vmatprep.subr.mxu0 0.0
    %1359 = vmatpush2.msra.mxu0 0.0
    %1360 = vmatprep.subr.mxu0 0.0
    %1361 = vmatpush2.msra.mxu0 0.0
    %1362 = vmatprep.subr.mxu0 0.0
    %1363 = vmatpush2.msra.mxu0 0.0
    %1364 = vmatprep.mubr.f32.mxu0 0.0
    %v1365 = vand.u32 %v1044, 4294901760
    %v1366 = vsub.f32 %v1044, %v1365
    %v1367 = vand.u32 %v1366, 4294901760
    %1368 = vmatmul.mubr.f32.gmra.mxu0 %v1367
    %v1369 = vpop.f32.mrf.mxu0
    %v1370 = vadd.f32 %v1293, %v1369
    %v1371 = vpop.f32.mrf.mxu0
    %1372 = vdwg.mxu0
    %1373 = vmatprep.subr.mxu0 0.0
    %1374 = vmatpush1.msra.mxu0 0.0
    %1375 = vmatprep.subr.mxu0 0.0
    %1376 = vmatpush1.msra.mxu0 0.0
    %1377 = vmatprep.subr.mxu0 0.0
    %1378 = vmatpush1.msra.mxu0 0.0
    %1379 = vmatprep.subr.mxu0 0.0
    %1380 = vmatpush1.msra.mxu0 0.0
    %1381 = vmatprep.subr.mxu0 0.0
    %1382 = vmatpush1.msra.mxu0 0.0
    %1383 = vmatprep.subr.mxu0 0.0
    %1384 = vmatpush1.msra.mxu0 0.0
    %1385 = vmatprep.subr.mxu0 0.0
    %1386 = vmatpush1.msra.mxu0 0.0
    %1387 = vmatprep.subr.mxu0 0.0
    %1388 = vmatpush1.msra.mxu0 0.0
    %1389 = vmatprep.subr.mxu0 0.0
    %1390 = vmatpush1.msra.mxu0 0.0
    %1391 = vmatprep.subr.mxu0 0.0
    %1392 = vmatpush1.msra.mxu0 0.0
    %1393 = vmatprep.subr.mxu0 0.0
    %1394 = vmatpush1.msra.mxu0 0.0
    %1395 = vmatprep.subr.mxu0 0.0
    %1396 = vmatpush1.msra.mxu0 0.0
    %1397 = vmatprep.subr.mxu0 0.0
    %v1398 = vand.u32 %v1041, 4294901760
    %v1399 = vsub.f32 %v1041, %v1398
    %v1400 = vand.u32 %v1399, 4294901760
    %1401 = vmatpush1.msra.mxu0 %v1400
    %1402 = vmatprep.subr.mxu0 0.0
    %v1403 = vand.u32 %v1040, 4294901760
    %v1404 = vsub.f32 %v1040, %v1403
    %v1405 = vand.u32 %v1404, 4294901760
    %1406 = vmatpush1.msra.mxu0 %v1405
    %1407 = vmatprep.subr.mxu0 0.0
    %v1408 = vand.u32 %v1039, 4294901760
    %v1409 = vsub.f32 %v1039, %v1408
    %v1410 = vand.u32 %v1409, 4294901760
    %1411 = vmatpush1.msra.mxu0 %v1410
    %1412 = vmatprep.subr.mxu0 0.0
    %v1413 = vand.u32 %v1038, 4294901760
    %v1414 = vsub.f32 %v1038, %v1413
    %v1415 = vand.u32 %v1414, 4294901760
    %1416 = vmatpush1.msra.mxu0 %v1415
    %1417 = vmatprep.subr.mxu0 0.0
    %1418 = vmatpush2.msra.mxu0 0.0
    %1419 = vmatprep.subr.mxu0 0.0
    %1420 = vmatpush2.msra.mxu0 0.0
    %1421 = vmatprep.subr.mxu0 0.0
    %1422 = vmatpush2.msra.mxu0 0.0
    %1423 = vmatprep.subr.mxu0 0.0
    %1424 = vmatpush2.msra.mxu0 0.0
    %1425 = vmatprep.subr.mxu0 0.0
    %1426 = vmatpush2.msra.mxu0 0.0
    %1427 = vmatprep.subr.mxu0 0.0
    %1428 = vmatpush2.msra.mxu0 0.0
    %1429 = vmatprep.subr.mxu0 0.0
    %1430 = vmatpush2.msra.mxu0 0.0
    %1431 = vmatprep.subr.mxu0 0.0
    %1432 = vmatpush2.msra.mxu0 0.0
    %1433 = vmatprep.subr.mxu0 0.0
    %1434 = vmatpush2.msra.mxu0 0.0
    %1435 = vmatprep.subr.mxu0 0.0
    %1436 = vmatpush2.msra.mxu0 0.0
    %1437 = vmatprep.subr.mxu0 0.0
    %1438 = vmatpush2.msra.mxu0 0.0
    %1439 = vmatprep.subr.mxu0 0.0
    %1440 = vmatpush2.msra.mxu0 0.0
    %1441 = vmatprep.subr.mxu0 0.0
    %1442 = vmatpush2.msra.mxu0 0.0
    %1443 = vmatprep.subr.mxu0 0.0
    %1444 = vmatpush2.msra.mxu0 0.0
    %1445 = vmatprep.subr.mxu0 0.0
    %1446 = vmatpush2.msra.mxu0 0.0
    %1447 = vmatprep.subr.mxu0 0.0
    %1448 = vmatpush2.msra.mxu0 0.0
    %1449 = vmatprep.mubr.f32.mxu0 0.0
    %v1450 = vand.u32 %v1044, 4294901760
    %1451 = vmatmul.mubr.f32.gmra.mxu0 %v1450
    %v1452 = vpop.f32.mrf.mxu0
    %v1453 = vadd.f32 %v1370, %v1452
    %v1454 = vpop.f32.mrf.mxu0
    %1455 = vdwg.mxu0
    %1456 = vmatprep.subr.mxu0 0.0
    %1457 = vmatpush1.msra.mxu0 0.0
    %1458 = vmatprep.subr.mxu0 0.0
    %1459 = vmatpush1.msra.mxu0 0.0
    %1460 = vmatprep.subr.mxu0 0.0
    %1461 = vmatpush1.msra.mxu0 0.0
    %1462 = vmatprep.subr.mxu0 0.0
    %1463 = vmatpush1.msra.mxu0 0.0
    %1464 = vmatprep.subr.mxu0 0.0
    %1465 = vmatpush1.msra.mxu0 0.0
    %1466 = vmatprep.subr.mxu0 0.0
    %1467 = vmatpush1.msra.mxu0 0.0
    %1468 = vmatprep.subr.mxu0 0.0
    %1469 = vmatpush1.msra.mxu0 0.0
    %1470 = vmatprep.subr.mxu0 0.0
    %1471 = vmatpush1.msra.mxu0 0.0
    %1472 = vmatprep.subr.mxu0 0.0
    %1473 = vmatpush1.msra.mxu0 0.0
    %1474 = vmatprep.subr.mxu0 0.0
    %1475 = vmatpush1.msra.mxu0 0.0
    %1476 = vmatprep.subr.mxu0 0.0
    %1477 = vmatpush1.msra.mxu0 0.0
    %1478 = vmatprep.subr.mxu0 0.0
    %1479 = vmatpush1.msra.mxu0 0.0
    %1480 = vmatprep.subr.mxu0 0.0
    %v1481 = vand.u32 %v1041, 4294901760
    %1482 = vmatpush1.msra.mxu0 %v1481
    %1483 = vmatprep.subr.mxu0 0.0
    %v1484 = vand.u32 %v1040, 4294901760
    %1485 = vmatpush1.msra.mxu0 %v1484
    %1486 = vmatprep.subr.mxu0 0.0
    %v1487 = vand.u32 %v1039, 4294901760
    %1488 = vmatpush1.msra.mxu0 %v1487
    %1489 = vmatprep.subr.mxu0 0.0
    %v1490 = vand.u32 %v1038, 4294901760
    %1491 = vmatpush1.msra.mxu0 %v1490
    %1492 = vmatprep.subr.mxu0 0.0
    %1493 = vmatpush2.msra.mxu0 0.0
    %1494 = vmatprep.subr.mxu0 0.0
    %1495 = vmatpush2.msra.mxu0 0.0
    %1496 = vmatprep.subr.mxu0 0.0
    %1497 = vmatpush2.msra.mxu0 0.0
    %1498 = vmatprep.subr.mxu0 0.0
    %1499 = vmatpush2.msra.mxu0 0.0
    %1500 = vmatprep.subr.mxu0 0.0
    %1501 = vmatpush2.msra.mxu0 0.0
    %1502 = vmatprep.subr.mxu0 0.0
    %1503 = vmatpush2.msra.mxu0 0.0
    %1504 = vmatprep.subr.mxu0 0.0
    %1505 = vmatpush2.msra.mxu0 0.0
    %1506 = vmatprep.subr.mxu0 0.0
    %1507 = vmatpush2.msra.mxu0 0.0
    %1508 = vmatprep.subr.mxu0 0.0
    %1509 = vmatpush2.msra.mxu0 0.0
    %1510 = vmatprep.subr.mxu0 0.0
    %1511 = vmatpush2.msra.mxu0 0.0
    %1512 = vmatprep.subr.mxu0 0.0
    %1513 = vmatpush2.msra.mxu0 0.0
    %1514 = vmatprep.subr.mxu0 0.0
    %1515 = vmatpush2.msra.mxu0 0.0
    %1516 = vmatprep.subr.mxu0 0.0
    %1517 = vmatpush2.msra.mxu0 0.0
    %1518 = vmatprep.subr.mxu0 0.0
    %1519 = vmatpush2.msra.mxu0 0.0
    %1520 = vmatprep.subr.mxu0 0.0
    %1521 = vmatpush2.msra.mxu0 0.0
    %1522 = vmatprep.subr.mxu0 0.0
    %1523 = vmatpush2.msra.mxu0 0.0
    %1524 = vmatprep.mubr.f32.mxu0 0.0
    %v1525 = vand.u32 %v1044, 4294901760
    %1526 = vmatmul.mubr.f32.gmra.mxu0 %v1525
    %v1527 = vpop.f32.mrf.mxu0
    %v1528 = vadd.f32 %v1453, %v1527
    %v1529 = vpop.f32.mrf.mxu0
    %1530 = vdwg.mxu0
    %v1531 = vadd.f32 %v1528, %v537
    %v1532 = vmul.f32 %v1531, 0.5
    %v1533 = vmul.f32 %v1531, 0.70710677
    %v1534 = verf.f32.pop %v1533
    %v1535 = vadd.f32 %v1534, 1.0
    %v1536 = vmul.f32 %v1532, %v1535
    %s1537 = scalar_lea.vmem [#allocation5], 120
    %v1538 = vld [vmem:[%s1537] sm:$0xff]
    %v1539 = vld [vmem:[%s1537 + $0x8] sm:$0xff]
    %v1540 = vld [vmem:[%s1537 + $0x10] sm:$0xff]
    %v1541 = vld [vmem:[%s1537 + $0x18] sm:$0xff]
    %v1542 = vld [vmem:[%s1537 + $0x20] sm:$0xff]
    %v1544 = vsel %vm44, %v1536, 0
    %1546 = vmatprep.subr.mxu0 0.0
    %1547 = vmatpush1.msra.mxu0 0.0
    %1548 = vmatprep.subr.mxu0 0.0
    %1549 = vmatpush1.msra.mxu0 0.0
    %1550 = vmatprep.subr.mxu0 0.0
    %1551 = vmatpush1.msra.mxu0 0.0
    %1552 = vmatprep.subr.mxu0 0.0
    %1553 = vmatpush1.msra.mxu0 0.0
    %1554 = vmatprep.subr.mxu0 0.0
    %1555 = vmatpush1.msra.mxu0 0.0
    %1556 = vmatprep.subr.mxu0 0.0
    %1557 = vmatpush1.msra.mxu0 0.0
    %1558 = vmatprep.subr.mxu0 0.0
    %1559 = vmatpush1.msra.mxu0 0.0
    %1560 = vmatprep.subr.mxu0 0.0
    %1561 = vmatpush1.msra.mxu0 0.0
    %1562 = vmatprep.subr.mxu0 0.0
    %1563 = vmatpush1.msra.mxu0 0.0
    %1564 = vmatprep.subr.mxu0 0.0
    %1565 = vmatpush1.msra.mxu0 0.0
    %1566 = vmatprep.subr.mxu0 0.0
    %1567 = vmatpush1.msra.mxu0 0.0
    %1568 = vmatprep.subr.mxu0 0.0
    %1569 = vmatpush1.msra.mxu0 0.0
    %1570 = vmatprep.subr.mxu0 0.0
    %v1571 = vand.u32 %v1541, 4294901760
    %1572 = vmatpush1.msra.mxu0 %v1571
    %1573 = vmatprep.subr.mxu0 0.0
    %v1574 = vand.u32 %v1540, 4294901760
    %1575 = vmatpush1.msra.mxu0 %v1574
    %1576 = vmatprep.subr.mxu0 0.0
    %v1577 = vand.u32 %v1539, 4294901760
    %1578 = vmatpush1.msra.mxu0 %v1577
    %1579 = vmatprep.subr.mxu0 0.0
    %v1580 = vand.u32 %v1538, 4294901760
    %1581 = vmatpush1.msra.mxu0 %v1580
    %1582 = vmatprep.subr.mxu0 0.0
    %1583 = vmatpush2.msra.mxu0 0.0
    %1584 = vmatprep.subr.mxu0 0.0
    %1585 = vmatpush2.msra.mxu0 0.0
    %1586 = vmatprep.subr.mxu0 0.0
    %1587 = vmatpush2.msra.mxu0 0.0
    %1588 = vmatprep.subr.mxu0 0.0
    %1589 = vmatpush2.msra.mxu0 0.0
    %1590 = vmatprep.subr.mxu0 0.0
    %1591 = vmatpush2.msra.mxu0 0.0
    %1592 = vmatprep.subr.mxu0 0.0
    %1593 = vmatpush2.msra.mxu0 0.0
    %1594 = vmatprep.subr.mxu0 0.0
    %1595 = vmatpush2.msra.mxu0 0.0
    %1596 = vmatprep.subr.mxu0 0.0
    %1597 = vmatpush2.msra.mxu0 0.0
    %1598 = vmatprep.subr.mxu0 0.0
    %1599 = vmatpush2.msra.mxu0 0.0
    %1600 = vmatprep.subr.mxu0 0.0
    %1601 = vmatpush2.msra.mxu0 0.0
    %1602 = vmatprep.subr.mxu0 0.0
    %1603 = vmatpush2.msra.mxu0 0.0
    %1604 = vmatprep.subr.mxu0 0.0
    %1605 = vmatpush2.msra.mxu0 0.0
    %1606 = vmatprep.subr.mxu0 0.0
    %1607 = vmatpush2.msra.mxu0 0.0
    %1608 = vmatprep.subr.mxu0 0.0
    %1609 = vmatpush2.msra.mxu0 0.0
    %1610 = vmatprep.subr.mxu0 0.0
    %1611 = vmatpush2.msra.mxu0 0.0
    %1612 = vmatprep.subr.mxu0 0.0
    %1613 = vmatpush2.msra.mxu0 0.0
    %1614 = vmatprep.mubr.f32.mxu0 0.0
    %v1615 = vand.u32 %v1544, 4294901760
    %v1616 = vsub.f32 %v1544, %v1615
    %v1617 = vand.u32 %v1616, 4294901760
    %v1618 = vsub.f32 %v1616, %v1617
    %v1619 = vand.u32 %v1618, 4294901760
    %1620 = vmatmul.mubr.f32.gmra.mxu0 %v1619
    %v1621 = vpop.f32.mrf.mxu0
    %v1622 = vadd.f32 %v1542, %v1621
    %v1623 = vpop.f32.mrf.mxu0
    %1624 = vdwg.mxu0
    %1625 = vmatprep.subr.mxu0 0.0
    %1626 = vmatpush1.msra.mxu0 0.0
    %1627 = vmatprep.subr.mxu0 0.0
    %1628 = vmatpush1.msra.mxu0 0.0
    %1629 = vmatprep.subr.mxu0 0.0
    %1630 = vmatpush1.msra.mxu0 0.0
    %1631 = vmatprep.subr.mxu0 0.0
    %1632 = vmatpush1.msra.mxu0 0.0
    %1633 = vmatprep.subr.mxu0 0.0
    %1634 = vmatpush1.msra.mxu0 0.0
    %1635 = vmatprep.subr.mxu0 0.0
    %1636 = vmatpush1.msra.mxu0 0.0
    %1637 = vmatprep.subr.mxu0 0.0
    %1638 = vmatpush1.msra.mxu0 0.0
    %1639 = vmatprep.subr.mxu0 0.0
    %1640 = vmatpush1.msra.mxu0 0.0
    %1641 = vmatprep.subr.mxu0 0.0
    %1642 = vmatpush1.msra.mxu0 0.0
    %1643 = vmatprep.subr.mxu0 0.0
    %1644 = vmatpush1.msra.mxu0 0.0
    %1645 = vmatprep.subr.mxu0 0.0
    %1646 = vmatpush1.msra.mxu0 0.0
    %1647 = vmatprep.subr.mxu0 0.0
    %1648 = vmatpush1.msra.mxu0 0.0
    %1649 = vmatprep.subr.mxu0 0.0
    %v1650 = vand.u32 %v1541, 4294901760
    %v1651 = vsub.f32 %v1541, %v1650
    %v1652 = vand.u32 %v1651, 4294901760
    %v1653 = vsub.f32 %v1651, %v1652
    %v1654 = vand.u32 %v1653, 4294901760
    %1655 = vmatpush1.msra.mxu0 %v1654
    %1656 = vmatprep.subr.mxu0 0.0
    %v1657 = vand.u32 %v1540, 4294901760
    %v1658 = vsub.f32 %v1540, %v1657
    %v1659 = vand.u32 %v1658, 4294901760
    %v1660 = vsub.f32 %v1658, %v1659
    %v1661 = vand.u32 %v1660, 4294901760
    %1662 = vmatpush1.msra.mxu0 %v1661
    %1663 = vmatprep.subr.mxu0 0.0
    %v1664 = vand.u32 %v1539, 4294901760
    %v1665 = vsub.f32 %v1539, %v1664
    %v1666 = vand.u32 %v1665, 4294901760
    %v1667 = vsub.f32 %v1665, %v1666
    %v1668 = vand.u32 %v1667, 4294901760
    %1669 = vmatpush1.msra.mxu0 %v1668
    %1670 = vmatprep.subr.mxu0 0.0
    %v1671 = vand.u32 %v1538, 4294901760
    %v1672 = vsub.f32 %v1538, %v1671
    %v1673 = vand.u32 %v1672, 4294901760
    %v1674 = vsub.f32 %v1672, %v1673
    %v1675 = vand.u32 %v1674, 4294901760
    %1676 = vmatpush1.msra.mxu0 %v1675
    %1677 = vmatprep.subr.mxu0 0.0
    %1678 = vmatpush2.msra.mxu0 0.0
    %1679 = vmatprep.subr.mxu0 0.0
    %1680 = vmatpush2.msra.mxu0 0.0
    %1681 = vmatprep.subr.mxu0 0.0
    %1682 = vmatpush2.msra.mxu0 0.0
    %1683 = vmatprep.subr.mxu0 0.0
    %1684 = vmatpush2.msra.mxu0 0.0
    %1685 = vmatprep.subr.mxu0 0.0
    %1686 = vmatpush2.msra.mxu0 0.0
    %1687 = vmatprep.subr.mxu0 0.0
    %1688 = vmatpush2.msra.mxu0 0.0
    %1689 = vmatprep.subr.mxu0 0.0
    %1690 = vmatpush2.msra.mxu0 0.0
    %1691 = vmatprep.subr.mxu0 0.0
    %1692 = vmatpush2.msra.mxu0 0.0
    %1693 = vmatprep.subr.mxu0 0.0
    %1694 = vmatpush2.msra.mxu0 0.0
    %1695 = vmatprep.subr.mxu0 0.0
    %1696 = vmatpush2.msra.mxu0 0.0
    %1697 = vmatprep.subr.mxu0 0.0
    %1698 = vmatpush2.msra.mxu0 0.0
    %1699 = vmatprep.subr.mxu0 0.0
    %1700 = vmatpush2.msra.mxu0 0.0
    %1701 = vmatprep.subr.mxu0 0.0
    %1702 = vmatpush2.msra.mxu0 0.0
    %1703 = vmatprep.subr.mxu0 0.0
    %1704 = vmatpush2.msra.mxu0 0.0
    %1705 = vmatprep.subr.mxu0 0.0
    %1706 = vmatpush2.msra.mxu0 0.0
    %1707 = vmatprep.subr.mxu0 0.0
    %1708 = vmatpush2.msra.mxu0 0.0
    %1709 = vmatprep.mubr.f32.mxu0 0.0
    %v1710 = vand.u32 %v1544, 4294901760
    %1711 = vmatmul.mubr.f32.gmra.mxu0 %v1710
    %v1712 = vpop.f32.mrf.mxu0
    %v1713 = vadd.f32 %v1622, %v1712
    %v1714 = vpop.f32.mrf.mxu0
    %1715 = vdwg.mxu0
    %1716 = vmatprep.subr.mxu0 0.0
    %1717 = vmatpush1.msra.mxu0 0.0
    %1718 = vmatprep.subr.mxu0 0.0
    %1719 = vmatpush1.msra.mxu0 0.0
    %1720 = vmatprep.subr.mxu0 0.0
    %1721 = vmatpush1.msra.mxu0 0.0
    %1722 = vmatprep.subr.mxu0 0.0
    %1723 = vmatpush1.msra.mxu0 0.0
    %1724 = vmatprep.subr.mxu0 0.0
    %1725 = vmatpush1.msra.mxu0 0.0
    %1726 = vmatprep.subr.mxu0 0.0
    %1727 = vmatpush1.msra.mxu0 0.0
    %1728 = vmatprep.subr.mxu0 0.0
    %1729 = vmatpush1.msra.mxu0 0.0
    %1730 = vmatprep.subr.mxu0 0.0
    %1731 = vmatpush1.msra.mxu0 0.0
    %1732 = vmatprep.subr.mxu0 0.0
    %1733 = vmatpush1.msra.mxu0 0.0
    %1734 = vmatprep.subr.mxu0 0.0
    %1735 = vmatpush1.msra.mxu0 0.0
    %1736 = vmatprep.subr.mxu0 0.0
    %1737 = vmatpush1.msra.mxu0 0.0
    %1738 = vmatprep.subr.mxu0 0.0
    %1739 = vmatpush1.msra.mxu0 0.0
    %1740 = vmatprep.subr.mxu0 0.0
    %v1741 = vand.u32 %v1541, 4294901760
    %v1742 = vsub.f32 %v1541, %v1741
    %1743 = vmatpush1.msra.mxu0 %v1742
    %1744 = vmatprep.subr.mxu0 0.0
    %v1745 = vand.u32 %v1540, 4294901760
    %v1746 = vsub.f32 %v1540, %v1745
    %1747 = vmatpush1.msra.mxu0 %v1746
    %1748 = vmatprep.subr.mxu0 0.0
    %v1749 = vand.u32 %v1539, 4294901760
    %v1750 = vsub.f32 %v1539, %v1749
    %1751 = vmatpush1.msra.mxu0 %v1750
    %1752 = vmatprep.subr.mxu0 0.0
    %v1753 = vand.u32 %v1538, 4294901760
    %v1754 = vsub.f32 %v1538, %v1753
    %1755 = vmatpush1.msra.mxu0 %v1754
    %1756 = vmatprep.subr.mxu0 0.0
    %1757 = vmatpush2.msra.mxu0 0.0
    %1758 = vmatprep.subr.mxu0 0.0
    %1759 = vmatpush2.msra.mxu0 0.0
    %1760 = vmatprep.subr.mxu0 0.0
    %1761 = vmatpush2.msra.mxu0 0.0
    %1762 = vmatprep.subr.mxu0 0.0
    %1763 = vmatpush2.msra.mxu0 0.0
    %1764 = vmatprep.subr.mxu0 0.0
    %1765 = vmatpush2.msra.mxu0 0.0
    %1766 = vmatprep.subr.mxu0 0.0
    %1767 = vmatpush2.msra.mxu0 0.0
    %1768 = vmatprep.subr.mxu0 0.0
    %1769 = vmatpush2.msra.mxu0 0.0
    %1770 = vmatprep.subr.mxu0 0.0
    %1771 = vmatpush2.msra.mxu0 0.0
    %1772 = vmatprep.subr.mxu0 0.0
    %1773 = vmatpush2.msra.mxu0 0.0
    %1774 = vmatprep.subr.mxu0 0.0
    %1775 = vmatpush2.msra.mxu0 0.0
    %1776 = vmatprep.subr.mxu0 0.0
    %1777 = vmatpush2.msra.mxu0 0.0
    %1778 = vmatprep.subr.mxu0 0.0
    %1779 = vmatpush2.msra.mxu0 0.0
    %1780 = vmatprep.subr.mxu0 0.0
    %1781 = vmatpush2.msra.mxu0 0.0
    %1782 = vmatprep.subr.mxu0 0.0
    %1783 = vmatpush2.msra.mxu0 0.0
    %1784 = vmatprep.subr.mxu0 0.0
    %1785 = vmatpush2.msra.mxu0 0.0
    %1786 = vmatprep.subr.mxu0 0.0
    %1787 = vmatpush2.msra.mxu0 0.0
    %1788 = vmatprep.mubr.f32.mxu0 0.0
    %v1789 = vand.u32 %v1544, 4294901760
    %v1790 = vsub.f32 %v1544, %v1789
    %1791 = vmatmul.mubr.f32.gmra.mxu0 %v1790
    %v1792 = vpop.f32.mrf.mxu0
    %v1793 = vadd.f32 %v1713, %v1792
    %v1794 = vpop.f32.mrf.mxu0
    %1795 = vdwg.mxu0
    %1796 = vmatprep.subr.mxu0 0.0
    %1797 = vmatpush1.msra.mxu0 0.0
    %1798 = vmatprep.subr.mxu0 0.0
    %1799 = vmatpush1.msra.mxu0 0.0
    %1800 = vmatprep.subr.mxu0 0.0
    %1801 = vmatpush1.msra.mxu0 0.0
    %1802 = vmatprep.subr.mxu0 0.0
    %1803 = vmatpush1.msra.mxu0 0.0
    %1804 = vmatprep.subr.mxu0 0.0
    %1805 = vmatpush1.msra.mxu0 0.0
    %1806 = vmatprep.subr.mxu0 0.0
    %1807 = vmatpush1.msra.mxu0 0.0
    %1808 = vmatprep.subr.mxu0 0.0
    %1809 = vmatpush1.msra.mxu0 0.0
    %1810 = vmatprep.subr.mxu0 0.0
    %1811 = vmatpush1.msra.mxu0 0.0
    %1812 = vmatprep.subr.mxu0 0.0
    %1813 = vmatpush1.msra.mxu0 0.0
    %1814 = vmatprep.subr.mxu0 0.0
    %1815 = vmatpush1.msra.mxu0 0.0
    %1816 = vmatprep.subr.mxu0 0.0
    %1817 = vmatpush1.msra.mxu0 0.0
    %1818 = vmatprep.subr.mxu0 0.0
    %1819 = vmatpush1.msra.mxu0 0.0
    %1820 = vmatprep.subr.mxu0 0.0
    %v1821 = vand.u32 %v1541, 4294901760
    %1822 = vmatpush1.msra.mxu0 %v1821
    %1823 = vmatprep.subr.mxu0 0.0
    %v1824 = vand.u32 %v1540, 4294901760
    %1825 = vmatpush1.msra.mxu0 %v1824
    %1826 = vmatprep.subr.mxu0 0.0
    %v1827 = vand.u32 %v1539, 4294901760
    %1828 = vmatpush1.msra.mxu0 %v1827
    %1829 = vmatprep.subr.mxu0 0.0
    %v1830 = vand.u32 %v1538, 4294901760
    %1831 = vmatpush1.msra.mxu0 %v1830
    %1832 = vmatprep.subr.mxu0 0.0
    %1833 = vmatpush2.msra.mxu0 0.0
    %1834 = vmatprep.subr.mxu0 0.0
    %1835 = vmatpush2.msra.mxu0 0.0
    %1836 = vmatprep.subr.mxu0 0.0
    %1837 = vmatpush2.msra.mxu0 0.0
    %1838 = vmatprep.subr.mxu0 0.0
    %1839 = vmatpush2.msra.mxu0 0.0
    %1840 = vmatprep.subr.mxu0 0.0
    %1841 = vmatpush2.msra.mxu0 0.0
    %1842 = vmatprep.subr.mxu0 0.0
    %1843 = vmatpush2.msra.mxu0 0.0
    %1844 = vmatprep.subr.mxu0 0.0
    %1845 = vmatpush2.msra.mxu0 0.0
    %1846 = vmatprep.subr.mxu0 0.0
    %1847 = vmatpush2.msra.mxu0 0.0
    %1848 = vmatprep.subr.mxu0 0.0
    %1849 = vmatpush2.msra.mxu0 0.0
    %1850 = vmatprep.subr.mxu0 0.0
    %1851 = vmatpush2.msra.mxu0 0.0
    %1852 = vmatprep.subr.mxu0 0.0
    %1853 = vmatpush2.msra.mxu0 0.0
    %1854 = vmatprep.subr.mxu0 0.0
    %1855 = vmatpush2.msra.mxu0 0.0
    %1856 = vmatprep.subr.mxu0 0.0
    %1857 = vmatpush2.msra.mxu0 0.0
    %1858 = vmatprep.subr.mxu0 0.0
    %1859 = vmatpush2.msra.mxu0 0.0
    %1860 = vmatprep.subr.mxu0 0.0
    %1861 = vmatpush2.msra.mxu0 0.0
    %1862 = vmatprep.subr.mxu0 0.0
    %1863 = vmatpush2.msra.mxu0 0.0
    %1864 = vmatprep.mubr.f32.mxu0 0.0
    %v1865 = vand.u32 %v1544, 4294901760
    %v1866 = vsub.f32 %v1544, %v1865
    %v1867 = vand.u32 %v1866, 4294901760
    %1868 = vmatmul.mubr.f32.gmra.mxu0 %v1867
    %v1869 = vpop.f32.mrf.mxu0
    %v1870 = vadd.f32 %v1793, %v1869
    %v1871 = vpop.f32.mrf.mxu0
    %1872 = vdwg.mxu0
    %1873 = vmatprep.subr.mxu0 0.0
    %1874 = vmatpush1.msra.mxu0 0.0
    %1875 = vmatprep.subr.mxu0 0.0
    %1876 = vmatpush1.msra.mxu0 0.0
    %1877 = vmatprep.subr.mxu0 0.0
    %1878 = vmatpush1.msra.mxu0 0.0
    %1879 = vmatprep.subr.mxu0 0.0
    %1880 = vmatpush1.msra.mxu0 0.0
    %1881 = vmatprep.subr.mxu0 0.0
    %1882 = vmatpush1.msra.mxu0 0.0
    %1883 = vmatprep.subr.mxu0 0.0
    %1884 = vmatpush1.msra.mxu0 0.0
    %1885 = vmatprep.subr.mxu0 0.0
    %1886 = vmatpush1.msra.mxu0 0.0
    %1887 = vmatprep.subr.mxu0 0.0
    %1888 = vmatpush1.msra.mxu0 0.0
    %1889 = vmatprep.subr.mxu0 0.0
    %1890 = vmatpush1.msra.mxu0 0.0
    %1891 = vmatprep.subr.mxu0 0.0
    %1892 = vmatpush1.msra.mxu0 0.0
    %1893 = vmatprep.subr.mxu0 0.0
    %1894 = vmatpush1.msra.mxu0 0.0
    %1895 = vmatprep.subr.mxu0 0.0
    %1896 = vmatpush1.msra.mxu0 0.0
    %1897 = vmatprep.subr.mxu0 0.0
    %v1898 = vand.u32 %v1541, 4294901760
    %v1899 = vsub.f32 %v1541, %v1898
    %v1900 = vand.u32 %v1899, 4294901760
    %1901 = vmatpush1.msra.mxu0 %v1900
    %1902 = vmatprep.subr.mxu0 0.0
    %v1903 = vand.u32 %v1540, 4294901760
    %v1904 = vsub.f32 %v1540, %v1903
    %v1905 = vand.u32 %v1904, 4294901760
    %1906 = vmatpush1.msra.mxu0 %v1905
    %1907 = vmatprep.subr.mxu0 0.0
    %v1908 = vand.u32 %v1539, 4294901760
    %v1909 = vsub.f32 %v1539, %v1908
    %v1910 = vand.u32 %v1909, 4294901760
    %1911 = vmatpush1.msra.mxu0 %v1910
    %1912 = vmatprep.subr.mxu0 0.0
    %v1913 = vand.u32 %v1538, 4294901760
    %v1914 = vsub.f32 %v1538, %v1913
    %v1915 = vand.u32 %v1914, 4294901760
    %1916 = vmatpush1.msra.mxu0 %v1915
    %1917 = vmatprep.subr.mxu0 0.0
    %1918 = vmatpush2.msra.mxu0 0.0
    %1919 = vmatprep.subr.mxu0 0.0
    %1920 = vmatpush2.msra.mxu0 0.0
    %1921 = vmatprep.subr.mxu0 0.0
    %1922 = vmatpush2.msra.mxu0 0.0
    %1923 = vmatprep.subr.mxu0 0.0
    %1924 = vmatpush2.msra.mxu0 0.0
    %1925 = vmatprep.subr.mxu0 0.0
    %1926 = vmatpush2.msra.mxu0 0.0
    %1927 = vmatprep.subr.mxu0 0.0
    %1928 = vmatpush2.msra.mxu0 0.0
    %1929 = vmatprep.subr.mxu0 0.0
    %1930 = vmatpush2.msra.mxu0 0.0
    %1931 = vmatprep.subr.mxu0 0.0
    %1932 = vmatpush2.msra.mxu0 0.0
    %1933 = vmatprep.subr.mxu0 0.0
    %1934 = vmatpush2.msra.mxu0 0.0
    %1935 = vmatprep.subr.mxu0 0.0
    %1936 = vmatpush2.msra.mxu0 0.0
    %1937 = vmatprep.subr.mxu0 0.0
    %1938 = vmatpush2.msra.mxu0 0.0
    %1939 = vmatprep.subr.mxu0 0.0
    %1940 = vmatpush2.msra.mxu0 0.0
    %1941 = vmatprep.subr.mxu0 0.0
    %1942 = vmatpush2.msra.mxu0 0.0
    %1943 = vmatprep.subr.mxu0 0.0
    %1944 = vmatpush2.msra.mxu0 0.0
    %1945 = vmatprep.subr.mxu0 0.0
    %1946 = vmatpush2.msra.mxu0 0.0
    %1947 = vmatprep.subr.mxu0 0.0
    %1948 = vmatpush2.msra.mxu0 0.0
    %1949 = vmatprep.mubr.f32.mxu0 0.0
    %v1950 = vand.u32 %v1544, 4294901760
    %1951 = vmatmul.mubr.f32.gmra.mxu0 %v1950
    %v1952 = vpop.f32.mrf.mxu0
    %v1953 = vadd.f32 %v1870, %v1952
    %v1954 = vpop.f32.mrf.mxu0
    %1955 = vdwg.mxu0
    %1956 = vmatprep.subr.mxu0 0.0
    %1957 = vmatpush1.msra.mxu0 0.0
    %1958 = vmatprep.subr.mxu0 0.0
    %1959 = vmatpush1.msra.mxu0 0.0
    %1960 = vmatprep.subr.mxu0 0.0
    %1961 = vmatpush1.msra.mxu0 0.0
    %1962 = vmatprep.subr.mxu0 0.0
    %1963 = vmatpush1.msra.mxu0 0.0
    %1964 = vmatprep.subr.mxu0 0.0
    %1965 = vmatpush1.msra.mxu0 0.0
    %1966 = vmatprep.subr.mxu0 0.0
    %1967 = vmatpush1.msra.mxu0 0.0
    %1968 = vmatprep.subr.mxu0 0.0
    %1969 = vmatpush1.msra.mxu0 0.0
    %1970 = vmatprep.subr.mxu0 0.0
    %1971 = vmatpush1.msra.mxu0 0.0
    %1972 = vmatprep.subr.mxu0 0.0
    %1973 = vmatpush1.msra.mxu0 0.0
    %1974 = vmatprep.subr.mxu0 0.0
    %1975 = vmatpush1.msra.mxu0 0.0
    %1976 = vmatprep.subr.mxu0 0.0
    %1977 = vmatpush1.msra.mxu0 0.0
    %1978 = vmatprep.subr.mxu0 0.0
    %1979 = vmatpush1.msra.mxu0 0.0
    %1980 = vmatprep.subr.mxu0 0.0
    %v1981 = vand.u32 %v1541, 4294901760
    %1982 = vmatpush1.msra.mxu0 %v1981
    %1983 = vmatprep.subr.mxu0 0.0
    %v1984 = vand.u32 %v1540, 4294901760
    %1985 = vmatpush1.msra.mxu0 %v1984
    %1986 = vmatprep.subr.mxu0 0.0
    %v1987 = vand.u32 %v1539, 4294901760
    %1988 = vmatpush1.msra.mxu0 %v1987
    %1989 = vmatprep.subr.mxu0 0.0
    %v1990 = vand.u32 %v1538, 4294901760
    %1991 = vmatpush1.msra.mxu0 %v1990
    %1992 = vmatprep.subr.mxu0 0.0
    %1993 = vmatpush2.msra.mxu0 0.0
    %1994 = vmatprep.subr.mxu0 0.0
    %1995 = vmatpush2.msra.mxu0 0.0
    %1996 = vmatprep.subr.mxu0 0.0
    %1997 = vmatpush2.msra.mxu0 0.0
    %1998 = vmatprep.subr.mxu0 0.0
    %1999 = vmatpush2.msra.mxu0 0.0
    %2000 = vmatprep.subr.mxu0 0.0
    %2001 = vmatpush2.msra.mxu0 0.0
    %2002 = vmatprep.subr.mxu0 0.0
    %2003 = vmatpush2.msra.mxu0 0.0
    %2004 = vmatprep.subr.mxu0 0.0
    %2005 = vmatpush2.msra.mxu0 0.0
    %2006 = vmatprep.subr.mxu0 0.0
    %2007 = vmatpush2.msra.mxu0 0.0
    %2008 = vmatprep.subr.mxu0 0.0
    %2009 = vmatpush2.msra.mxu0 0.0
    %2010 = vmatprep.subr.mxu0 0.0
    %2011 = vmatpush2.msra.mxu0 0.0
    %2012 = vmatprep.subr.mxu0 0.0
    %2013 = vmatpush2.msra.mxu0 0.0
    %2014 = vmatprep.subr.mxu0 0.0
    %2015 = vmatpush2.msra.mxu0 0.0
    %2016 = vmatprep.subr.mxu0 0.0
    %2017 = vmatpush2.msra.mxu0 0.0
    %2018 = vmatprep.subr.mxu0 0.0
    %2019 = vmatpush2.msra.mxu0 0.0
    %2020 = vmatprep.subr.mxu0 0.0
    %2021 = vmatpush2.msra.mxu0 0.0
    %2022 = vmatprep.subr.mxu0 0.0
    %2023 = vmatpush2.msra.mxu0 0.0
    %2024 = vmatprep.mubr.f32.mxu0 0.0
    %v2025 = vand.u32 %v1544, 4294901760
    %2026 = vmatmul.mubr.f32.gmra.mxu0 %v2025
    %v2027 = vpop.f32.mrf.mxu0
    %v2028 = vadd.f32 %v1953, %v2027
    %v2029 = vpop.f32.mrf.mxu0
    %2030 = vdwg.mxu0
    %v2031 = vmul.f32 %v2028, 0.5
    %v2032 = vmul.f32 %v2028, 0.70710677
    %v2033 = verf.f32.pop %v2032
    %v2034 = vadd.f32 %v2033, 1.0
    %v2035 = vmul.f32 %v2031, %v2034
    %s2036 = scalar_lea.vmem [#allocation5], 160
    %v2037 = vld [vmem:[%s2036] sm:$0xff]
    %v2038 = vld [vmem:[%s2036 + $0x8] sm:$0xff]
    %v2039 = vld [vmem:[%s2036 + $0x10] sm:$0xff]
    %v2040 = vld [vmem:[%s2036 + $0x18] sm:$0xff]
    %v2041 = vld [vmem:[%s2036 + $0x20] sm:$0xff]
    %v2043 = vsel %vm44, %v2035, 0
    %2045 = vmatprep.subr.mxu0 0.0
    %2046 = vmatpush1.msra.mxu0 0.0
    %2047 = vmatprep.subr.mxu0 0.0
    %2048 = vmatpush1.msra.mxu0 0.0
    %2049 = vmatprep.subr.mxu0 0.0
    %2050 = vmatpush1.msra.mxu0 0.0
    %2051 = vmatprep.subr.mxu0 0.0
    %2052 = vmatpush1.msra.mxu0 0.0
    %2053 = vmatprep.subr.mxu0 0.0
    %2054 = vmatpush1.msra.mxu0 0.0
    %2055 = vmatprep.subr.mxu0 0.0
    %2056 = vmatpush1.msra.mxu0 0.0
    %2057 = vmatprep.subr.mxu0 0.0
    %2058 = vmatpush1.msra.mxu0 0.0
    %2059 = vmatprep.subr.mxu0 0.0
    %2060 = vmatpush1.msra.mxu0 0.0
    %2061 = vmatprep.subr.mxu0 0.0
    %2062 = vmatpush1.msra.mxu0 0.0
    %2063 = vmatprep.subr.mxu0 0.0
    %2064 = vmatpush1.msra.mxu0 0.0
    %2065 = vmatprep.subr.mxu0 0.0
    %2066 = vmatpush1.msra.mxu0 0.0
    %2067 = vmatprep.subr.mxu0 0.0
    %2068 = vmatpush1.msra.mxu0 0.0
    %2069 = vmatprep.subr.mxu0 0.0
    %v2070 = vand.u32 %v2040, 4294901760
    %2071 = vmatpush1.msra.mxu0 %v2070
    %2072 = vmatprep.subr.mxu0 0.0
    %v2073 = vand.u32 %v2039, 4294901760
    %2074 = vmatpush1.msra.mxu0 %v2073
    %2075 = vmatprep.subr.mxu0 0.0
    %v2076 = vand.u32 %v2038, 4294901760
    %2077 = vmatpush1.msra.mxu0 %v2076
    %2078 = vmatprep.subr.mxu0 0.0
    %v2079 = vand.u32 %v2037, 4294901760
    %2080 = vmatpush1.msra.mxu0 %v2079
    %2081 = vmatprep.subr.mxu0 0.0
    %2082 = vmatpush2.msra.mxu0 0.0
    %2083 = vmatprep.subr.mxu0 0.0
    %2084 = vmatpush2.msra.mxu0 0.0
    %2085 = vmatprep.subr.mxu0 0.0
    %2086 = vmatpush2.msra.mxu0 0.0
    %2087 = vmatprep.subr.mxu0 0.0
    %2088 = vmatpush2.msra.mxu0 0.0
    %2089 = vmatprep.subr.mxu0 0.0
    %2090 = vmatpush2.msra.mxu0 0.0
    %2091 = vmatprep.subr.mxu0 0.0
    %2092 = vmatpush2.msra.mxu0 0.0
    %2093 = vmatprep.subr.mxu0 0.0
    %2094 = vmatpush2.msra.mxu0 0.0
    %2095 = vmatprep.subr.mxu0 0.0
    %2096 = vmatpush2.msra.mxu0 0.0
    %2097 = vmatprep.subr.mxu0 0.0
    %2098 = vmatpush2.msra.mxu0 0.0
    %2099 = vmatprep.subr.mxu0 0.0
    %2100 = vmatpush2.msra.mxu0 0.0
    %2101 = vmatprep.subr.mxu0 0.0
    %2102 = vmatpush2.msra.mxu0 0.0
    %2103 = vmatprep.subr.mxu0 0.0
    %2104 = vmatpush2.msra.mxu0 0.0
    %2105 = vmatprep.subr.mxu0 0.0
    %2106 = vmatpush2.msra.mxu0 0.0
    %2107 = vmatprep.subr.mxu0 0.0
    %2108 = vmatpush2.msra.mxu0 0.0
    %2109 = vmatprep.subr.mxu0 0.0
    %2110 = vmatpush2.msra.mxu0 0.0
    %2111 = vmatprep.subr.mxu0 0.0
    %2112 = vmatpush2.msra.mxu0 0.0
    %2113 = vmatprep.mubr.f32.mxu0 0.0
    %v2114 = vand.u32 %v2043, 4294901760
    %v2115 = vsub.f32 %v2043, %v2114
    %v2116 = vand.u32 %v2115, 4294901760
    %v2117 = vsub.f32 %v2115, %v2116
    %v2118 = vand.u32 %v2117, 4294901760
    %2119 = vmatmul.mubr.f32.gmra.mxu0 %v2118
    %v2120 = vpop.f32.mrf.mxu0
    %v2121 = vadd.f32 %v2041, %v2120
    %v2122 = vpop.f32.mrf.mxu0
    %2123 = vdwg.mxu0
    %2124 = vmatprep.subr.mxu0 0.0
    %2125 = vmatpush1.msra.mxu0 0.0
    %2126 = vmatprep.subr.mxu0 0.0
    %2127 = vmatpush1.msra.mxu0 0.0
    %2128 = vmatprep.subr.mxu0 0.0
    %2129 = vmatpush1.msra.mxu0 0.0
    %2130 = vmatprep.subr.mxu0 0.0
    %2131 = vmatpush1.msra.mxu0 0.0
    %2132 = vmatprep.subr.mxu0 0.0
    %2133 = vmatpush1.msra.mxu0 0.0
    %2134 = vmatprep.subr.mxu0 0.0
    %2135 = vmatpush1.msra.mxu0 0.0
    %2136 = vmatprep.subr.mxu0 0.0
    %2137 = vmatpush1.msra.mxu0 0.0
    %2138 = vmatprep.subr.mxu0 0.0
    %2139 = vmatpush1.msra.mxu0 0.0
    %2140 = vmatprep.subr.mxu0 0.0
    %2141 = vmatpush1.msra.mxu0 0.0
    %2142 = vmatprep.subr.mxu0 0.0
    %2143 = vmatpush1.msra.mxu0 0.0
    %2144 = vmatprep.subr.mxu0 0.0
    %2145 = vmatpush1.msra.mxu0 0.0
    %2146 = vmatprep.subr.mxu0 0.0
    %2147 = vmatpush1.msra.mxu0 0.0
    %2148 = vmatprep.subr.mxu0 0.0
    %v2149 = vand.u32 %v2040, 4294901760
    %v2150 = vsub.f32 %v2040, %v2149
    %v2151 = vand.u32 %v2150, 4294901760
    %v2152 = vsub.f32 %v2150, %v2151
    %v2153 = vand.u32 %v2152, 4294901760
    %2154 = vmatpush1.msra.mxu0 %v2153
    %2155 = vmatprep.subr.mxu0 0.0
    %v2156 = vand.u32 %v2039, 4294901760
    %v2157 = vsub.f32 %v2039, %v2156
    %v2158 = vand.u32 %v2157, 4294901760
    %v2159 = vsub.f32 %v2157, %v2158
    %v2160 = vand.u32 %v2159, 4294901760
    %2161 = vmatpush1.msra.mxu0 %v2160
    %2162 = vmatprep.subr.mxu0 0.0
    %v2163 = vand.u32 %v2038, 4294901760
    %v2164 = vsub.f32 %v2038, %v2163
    %v2165 = vand.u32 %v2164, 4294901760
    %v2166 = vsub.f32 %v2164, %v2165
    %v2167 = vand.u32 %v2166, 4294901760
    %2168 = vmatpush1.msra.mxu0 %v2167
    %2169 = vmatprep.subr.mxu0 0.0
    %v2170 = vand.u32 %v2037, 4294901760
    %v2171 = vsub.f32 %v2037, %v2170
    %v2172 = vand.u32 %v2171, 4294901760
    %v2173 = vsub.f32 %v2171, %v2172
    %v2174 = vand.u32 %v2173, 4294901760
    %2175 = vmatpush1.msra.mxu0 %v2174
    %2176 = vmatprep.subr.mxu0 0.0
    %2177 = vmatpush2.msra.mxu0 0.0
    %2178 = vmatprep.subr.mxu0 0.0
    %2179 = vmatpush2.msra.mxu0 0.0
    %2180 = vmatprep.subr.mxu0 0.0
    %2181 = vmatpush2.msra.mxu0 0.0
    %2182 = vmatprep.subr.mxu0 0.0
    %2183 = vmatpush2.msra.mxu0 0.0
    %2184 = vmatprep.subr.mxu0 0.0
    %2185 = vmatpush2.msra.mxu0 0.0
    %2186 = vmatprep.subr.mxu0 0.0
    %2187 = vmatpush2.msra.mxu0 0.0
    %2188 = vmatprep.subr.mxu0 0.0
    %2189 = vmatpush2.msra.mxu0 0.0
    %2190 = vmatprep.subr.mxu0 0.0
    %2191 = vmatpush2.msra.mxu0 0.0
    %2192 = vmatprep.subr.mxu0 0.0
    %2193 = vmatpush2.msra.mxu0 0.0
    %2194 = vmatprep.subr.mxu0 0.0
    %2195 = vmatpush2.msra.mxu0 0.0
    %2196 = vmatprep.subr.mxu0 0.0
    %2197 = vmatpush2.msra.mxu0 0.0
    %2198 = vmatprep.subr.mxu0 0.0
    %2199 = vmatpush2.msra.mxu0 0.0
    %2200 = vmatprep.subr.mxu0 0.0
    %2201 = vmatpush2.msra.mxu0 0.0
    %2202 = vmatprep.subr.mxu0 0.0
    %2203 = vmatpush2.msra.mxu0 0.0
    %2204 = vmatprep.subr.mxu0 0.0
    %2205 = vmatpush2.msra.mxu0 0.0
    %2206 = vmatprep.subr.mxu0 0.0
    %2207 = vmatpush2.msra.mxu0 0.0
    %2208 = vmatprep.mubr.f32.mxu0 0.0
    %v2209 = vand.u32 %v2043, 4294901760
    %2210 = vmatmul.mubr.f32.gmra.mxu0 %v2209
    %v2211 = vpop.f32.mrf.mxu0
    %v2212 = vadd.f32 %v2121, %v2211
    %v2213 = vpop.f32.mrf.mxu0
    %2214 = vdwg.mxu0
    %2215 = vmatprep.subr.mxu0 0.0
    %2216 = vmatpush1.msra.mxu0 0.0
    %2217 = vmatprep.subr.mxu0 0.0
    %2218 = vmatpush1.msra.mxu0 0.0
    %2219 = vmatprep.subr.mxu0 0.0
    %2220 = vmatpush1.msra.mxu0 0.0
    %2221 = vmatprep.subr.mxu0 0.0
    %2222 = vmatpush1.msra.mxu0 0.0
    %2223 = vmatprep.subr.mxu0 0.0
    %2224 = vmatpush1.msra.mxu0 0.0
    %2225 = vmatprep.subr.mxu0 0.0
    %2226 = vmatpush1.msra.mxu0 0.0
    %2227 = vmatprep.subr.mxu0 0.0
    %2228 = vmatpush1.msra.mxu0 0.0
    %2229 = vmatprep.subr.mxu0 0.0
    %2230 = vmatpush1.msra.mxu0 0.0
    %2231 = vmatprep.subr.mxu0 0.0
    %2232 = vmatpush1.msra.mxu0 0.0
    %2233 = vmatprep.subr.mxu0 0.0
    %2234 = vmatpush1.msra.mxu0 0.0
    %2235 = vmatprep.subr.mxu0 0.0
    %2236 = vmatpush1.msra.mxu0 0.0
    %2237 = vmatprep.subr.mxu0 0.0
    %2238 = vmatpush1.msra.mxu0 0.0
    %2239 = vmatprep.subr.mxu0 0.0
    %v2240 = vand.u32 %v2040, 4294901760
    %v2241 = vsub.f32 %v2040, %v2240
    %2242 = vmatpush1.msra.mxu0 %v2241
    %2243 = vmatprep.subr.mxu0 0.0
    %v2244 = vand.u32 %v2039, 4294901760
    %v2245 = vsub.f32 %v2039, %v2244
    %2246 = vmatpush1.msra.mxu0 %v2245
    %2247 = vmatprep.subr.mxu0 0.0
    %v2248 = vand.u32 %v2038, 4294901760
    %v2249 = vsub.f32 %v2038, %v2248
    %2250 = vmatpush1.msra.mxu0 %v2249
    %2251 = vmatprep.subr.mxu0 0.0
    %v2252 = vand.u32 %v2037, 4294901760
    %v2253 = vsub.f32 %v2037, %v2252
    %2254 = vmatpush1.msra.mxu0 %v2253
    %2255 = vmatprep.subr.mxu0 0.0
    %2256 = vmatpush2.msra.mxu0 0.0
    %2257 = vmatprep.subr.mxu0 0.0
    %2258 = vmatpush2.msra.mxu0 0.0
    %2259 = vmatprep.subr.mxu0 0.0
    %2260 = vmatpush2.msra.mxu0 0.0
    %2261 = vmatprep.subr.mxu0 0.0
    %2262 = vmatpush2.msra.mxu0 0.0
    %2263 = vmatprep.subr.mxu0 0.0
    %2264 = vmatpush2.msra.mxu0 0.0
    %2265 = vmatprep.subr.mxu0 0.0
    %2266 = vmatpush2.msra.mxu0 0.0
    %2267 = vmatprep.subr.mxu0 0.0
    %2268 = vmatpush2.msra.mxu0 0.0
    %2269 = vmatprep.subr.mxu0 0.0
    %2270 = vmatpush2.msra.mxu0 0.0
    %2271 = vmatprep.subr.mxu0 0.0
    %2272 = vmatpush2.msra.mxu0 0.0
    %2273 = vmatprep.subr.mxu0 0.0
    %2274 = vmatpush2.msra.mxu0 0.0
    %2275 = vmatprep.subr.mxu0 0.0
    %2276 = vmatpush2.msra.mxu0 0.0
    %2277 = vmatprep.subr.mxu0 0.0
    %2278 = vmatpush2.msra.mxu0 0.0
    %2279 = vmatprep.subr.mxu0 0.0
    %2280 = vmatpush2.msra.mxu0 0.0
    %2281 = vmatprep.subr.mxu0 0.0
    %2282 = vmatpush2.msra.mxu0 0.0
    %2283 = vmatprep.subr.mxu0 0.0
    %2284 = vmatpush2.msra.mxu0 0.0
    %2285 = vmatprep.subr.mxu0 0.0
    %2286 = vmatpush2.msra.mxu0 0.0
    %2287 = vmatprep.mubr.f32.mxu0 0.0
    %v2288 = vand.u32 %v2043, 4294901760
    %v2289 = vsub.f32 %v2043, %v2288
    %2290 = vmatmul.mubr.f32.gmra.mxu0 %v2289
    %v2291 = vpop.f32.mrf.mxu0
    %v2292 = vadd.f32 %v2212, %v2291
    %v2293 = vpop.f32.mrf.mxu0
    %2294 = vdwg.mxu0
    %2295 = vmatprep.subr.mxu0 0.0
    %2296 = vmatpush1.msra.mxu0 0.0
    %2297 = vmatprep.subr.mxu0 0.0
    %2298 = vmatpush1.msra.mxu0 0.0
    %2299 = vmatprep.subr.mxu0 0.0
    %2300 = vmatpush1.msra.mxu0 0.0
    %2301 = vmatprep.subr.mxu0 0.0
    %2302 = vmatpush1.msra.mxu0 0.0
    %2303 = vmatprep.subr.mxu0 0.0
    %2304 = vmatpush1.msra.mxu0 0.0
    %2305 = vmatprep.subr.mxu0 0.0
    %2306 = vmatpush1.msra.mxu0 0.0
    %2307 = vmatprep.subr.mxu0 0.0
    %2308 = vmatpush1.msra.mxu0 0.0
    %2309 = vmatprep.subr.mxu0 0.0
    %2310 = vmatpush1.msra.mxu0 0.0
    %2311 = vmatprep.subr.mxu0 0.0
    %2312 = vmatpush1.msra.mxu0 0.0
    %2313 = vmatprep.subr.mxu0 0.0
    %2314 = vmatpush1.msra.mxu0 0.0
    %2315 = vmatprep.subr.mxu0 0.0
    %2316 = vmatpush1.msra.mxu0 0.0
    %2317 = vmatprep.subr.mxu0 0.0
    %2318 = vmatpush1.msra.mxu0 0.0
    %2319 = vmatprep.subr.mxu0 0.0
    %v2320 = vand.u32 %v2040, 4294901760
    %2321 = vmatpush1.msra.mxu0 %v2320
    %2322 = vmatprep.subr.mxu0 0.0
    %v2323 = vand.u32 %v2039, 4294901760
    %2324 = vmatpush1.msra.mxu0 %v2323
    %2325 = vmatprep.subr.mxu0 0.0
    %v2326 = vand.u32 %v2038, 4294901760
    %2327 = vmatpush1.msra.mxu0 %v2326
    %2328 = vmatprep.subr.mxu0 0.0
    %v2329 = vand.u32 %v2037, 4294901760
    %2330 = vmatpush1.msra.mxu0 %v2329
    %2331 = vmatprep.subr.mxu0 0.0
    %2332 = vmatpush2.msra.mxu0 0.0
    %2333 = vmatprep.subr.mxu0 0.0
    %2334 = vmatpush2.msra.mxu0 0.0
    %2335 = vmatprep.subr.mxu0 0.0
    %2336 = vmatpush2.msra.mxu0 0.0
    %2337 = vmatprep.subr.mxu0 0.0
    %2338 = vmatpush2.msra.mxu0 0.0
    %2339 = vmatprep.subr.mxu0 0.0
    %2340 = vmatpush2.msra.mxu0 0.0
    %2341 = vmatprep.subr.mxu0 0.0
    %2342 = vmatpush2.msra.mxu0 0.0
    %2343 = vmatprep.subr.mxu0 0.0
    %2344 = vmatpush2.msra.mxu0 0.0
    %2345 = vmatprep.subr.mxu0 0.0
    %2346 = vmatpush2.msra.mxu0 0.0
    %2347 = vmatprep.subr.mxu0 0.0
    %2348 = vmatpush2.msra.mxu0 0.0
    %2349 = vmatprep.subr.mxu0 0.0
    %2350 = vmatpush2.msra.mxu0 0.0
    %2351 = vmatprep.subr.mxu0 0.0
    %2352 = vmatpush2.msra.mxu0 0.0
    %2353 = vmatprep.subr.mxu0 0.0
    %2354 = vmatpush2.msra.mxu0 0.0
    %2355 = vmatprep.subr.mxu0 0.0
    %2356 = vmatpush2.msra.mxu0 0.0
    %2357 = vmatprep.subr.mxu0 0.0
    %2358 = vmatpush2.msra.mxu0 0.0
    %2359 = vmatprep.subr.mxu0 0.0
    %2360 = vmatpush2.msra.mxu0 0.0
    %2361 = vmatprep.subr.mxu0 0.0
    %2362 = vmatpush2.msra.mxu0 0.0
    %2363 = vmatprep.mubr.f32.mxu0 0.0
    %v2364 = vand.u32 %v2043, 4294901760
    %v2365 = vsub.f32 %v2043, %v2364
    %v2366 = vand.u32 %v2365, 4294901760
    %2367 = vmatmul.mubr.f32.gmra.mxu0 %v2366
    %v2368 = vpop.f32.mrf.mxu0
    %v2369 = vadd.f32 %v2292, %v2368
    %v2370 = vpop.f32.mrf.mxu0
    %2371 = vdwg.mxu0
    %2372 = vmatprep.subr.mxu0 0.0
    %2373 = vmatpush1.msra.mxu0 0.0
    %2374 = vmatprep.subr.mxu0 0.0
    %2375 = vmatpush1.msra.mxu0 0.0
    %2376 = vmatprep.subr.mxu0 0.0
    %2377 = vmatpush1.msra.mxu0 0.0
    %2378 = vmatprep.subr.mxu0 0.0
    %2379 = vmatpush1.msra.mxu0 0.0
    %2380 = vmatprep.subr.mxu0 0.0
    %2381 = vmatpush1.msra.mxu0 0.0
    %2382 = vmatprep.subr.mxu0 0.0
    %2383 = vmatpush1.msra.mxu0 0.0
    %2384 = vmatprep.subr.mxu0 0.0
    %2385 = vmatpush1.msra.mxu0 0.0
    %2386 = vmatprep.subr.mxu0 0.0
    %2387 = vmatpush1.msra.mxu0 0.0
    %2388 = vmatprep.subr.mxu0 0.0
    %2389 = vmatpush1.msra.mxu0 0.0
    %2390 = vmatprep.subr.mxu0 0.0
    %2391 = vmatpush1.msra.mxu0 0.0
    %2392 = vmatprep.subr.mxu0 0.0
    %2393 = vmatpush1.msra.mxu0 0.0
    %2394 = vmatprep.subr.mxu0 0.0
    %2395 = vmatpush1.msra.mxu0 0.0
    %2396 = vmatprep.subr.mxu0 0.0
    %v2397 = vand.u32 %v2040, 4294901760
    %v2398 = vsub.f32 %v2040, %v2397
    %v2399 = vand.u32 %v2398, 4294901760
    %2400 = vmatpush1.msra.mxu0 %v2399
    %2401 = vmatprep.subr.mxu0 0.0
    %v2402 = vand.u32 %v2039, 4294901760
    %v2403 = vsub.f32 %v2039, %v2402
    %v2404 = vand.u32 %v2403, 4294901760
    %2405 = vmatpush1.msra.mxu0 %v2404
    %2406 = vmatprep.subr.mxu0 0.0
    %v2407 = vand.u32 %v2038, 4294901760
    %v2408 = vsub.f32 %v2038, %v2407
    %v2409 = vand.u32 %v2408, 4294901760
    %2410 = vmatpush1.msra.mxu0 %v2409
    %2411 = vmatprep.subr.mxu0 0.0
    %v2412 = vand.u32 %v2037, 4294901760
    %v2413 = vsub.f32 %v2037, %v2412
    %v2414 = vand.u32 %v2413, 4294901760
    %2415 = vmatpush1.msra.mxu0 %v2414
    %2416 = vmatprep.subr.mxu0 0.0
    %2417 = vmatpush2.msra.mxu0 0.0
    %2418 = vmatprep.subr.mxu0 0.0
    %2419 = vmatpush2.msra.mxu0 0.0
    %2420 = vmatprep.subr.mxu0 0.0
    %2421 = vmatpush2.msra.mxu0 0.0
    %2422 = vmatprep.subr.mxu0 0.0
    %2423 = vmatpush2.msra.mxu0 0.0
    %2424 = vmatprep.subr.mxu0 0.0
    %2425 = vmatpush2.msra.mxu0 0.0
    %2426 = vmatprep.subr.mxu0 0.0
    %2427 = vmatpush2.msra.mxu0 0.0
    %2428 = vmatprep.subr.mxu0 0.0
    %2429 = vmatpush2.msra.mxu0 0.0
    %2430 = vmatprep.subr.mxu0 0.0
    %2431 = vmatpush2.msra.mxu0 0.0
    %2432 = vmatprep.subr.mxu0 0.0
    %2433 = vmatpush2.msra.mxu0 0.0
    %2434 = vmatprep.subr.mxu0 0.0
    %2435 = vmatpush2.msra.mxu0 0.0
    %2436 = vmatprep.subr.mxu0 0.0
    %2437 = vmatpush2.msra.mxu0 0.0
    %2438 = vmatprep.subr.mxu0 0.0
    %2439 = vmatpush2.msra.mxu0 0.0
    %2440 = vmatprep.subr.mxu0 0.0
    %2441 = vmatpush2.msra.mxu0 0.0
    %2442 = vmatprep.subr.mxu0 0.0
    %2443 = vmatpush2.msra.mxu0 0.0
    %2444 = vmatprep.subr.mxu0 0.0
    %2445 = vmatpush2.msra.mxu0 0.0
    %2446 = vmatprep.subr.mxu0 0.0
    %2447 = vmatpush2.msra.mxu0 0.0
    %2448 = vmatprep.mubr.f32.mxu0 0.0
    %v2449 = vand.u32 %v2043, 4294901760
    %2450 = vmatmul.mubr.f32.gmra.mxu0 %v2449
    %v2451 = vpop.f32.mrf.mxu0
    %v2452 = vadd.f32 %v2369, %v2451
    %v2453 = vpop.f32.mrf.mxu0
    %2454 = vdwg.mxu0
    %2455 = vmatprep.subr.mxu0 0.0
    %2456 = vmatpush1.msra.mxu0 0.0
    %2457 = vmatprep.subr.mxu0 0.0
    %2458 = vmatpush1.msra.mxu0 0.0
    %2459 = vmatprep.subr.mxu0 0.0
    %2460 = vmatpush1.msra.mxu0 0.0
    %2461 = vmatprep.subr.mxu0 0.0
    %2462 = vmatpush1.msra.mxu0 0.0
    %2463 = vmatprep.subr.mxu0 0.0
    %2464 = vmatpush1.msra.mxu0 0.0
    %2465 = vmatprep.subr.mxu0 0.0
    %2466 = vmatpush1.msra.mxu0 0.0
    %2467 = vmatprep.subr.mxu0 0.0
    %2468 = vmatpush1.msra.mxu0 0.0
    %2469 = vmatprep.subr.mxu0 0.0
    %2470 = vmatpush1.msra.mxu0 0.0
    %2471 = vmatprep.subr.mxu0 0.0
    %2472 = vmatpush1.msra.mxu0 0.0
    %2473 = vmatprep.subr.mxu0 0.0
    %2474 = vmatpush1.msra.mxu0 0.0
    %2475 = vmatprep.subr.mxu0 0.0
    %2476 = vmatpush1.msra.mxu0 0.0
    %2477 = vmatprep.subr.mxu0 0.0
    %2478 = vmatpush1.msra.mxu0 0.0
    %2479 = vmatprep.subr.mxu0 0.0
    %v2480 = vand.u32 %v2040, 4294901760
    %2481 = vmatpush1.msra.mxu0 %v2480
    %2482 = vmatprep.subr.mxu0 0.0
    %v2483 = vand.u32 %v2039, 4294901760
    %2484 = vmatpush1.msra.mxu0 %v2483
    %2485 = vmatprep.subr.mxu0 0.0
    %v2486 = vand.u32 %v2038, 4294901760
    %2487 = vmatpush1.msra.mxu0 %v2486
    %2488 = vmatprep.subr.mxu0 0.0
    %v2489 = vand.u32 %v2037, 4294901760
    %2490 = vmatpush1.msra.mxu0 %v2489
    %2491 = vmatprep.subr.mxu0 0.0
    %2492 = vmatpush2.msra.mxu0 0.0
    %2493 = vmatprep.subr.mxu0 0.0
    %2494 = vmatpush2.msra.mxu0 0.0
    %2495 = vmatprep.subr.mxu0 0.0
    %2496 = vmatpush2.msra.mxu0 0.0
    %2497 = vmatprep.subr.mxu0 0.0
    %2498 = vmatpush2.msra.mxu0 0.0
    %2499 = vmatprep.subr.mxu0 0.0
    %2500 = vmatpush2.msra.mxu0 0.0
    %2501 = vmatprep.subr.mxu0 0.0
    %2502 = vmatpush2.msra.mxu0 0.0
    %2503 = vmatprep.subr.mxu0 0.0
    %2504 = vmatpush2.msra.mxu0 0.0
    %2505 = vmatprep.subr.mxu0 0.0
    %2506 = vmatpush2.msra.mxu0 0.0
    %2507 = vmatprep.subr.mxu0 0.0
    %2508 = vmatpush2.msra.mxu0 0.0
    %2509 = vmatprep.subr.mxu0 0.0
    %2510 = vmatpush2.msra.mxu0 0.0
    %2511 = vmatprep.subr.mxu0 0.0
    %2512 = vmatpush2.msra.mxu0 0.0
    %2513 = vmatprep.subr.mxu0 0.0
    %2514 = vmatpush2.msra.mxu0 0.0
    %2515 = vmatprep.subr.mxu0 0.0
    %2516 = vmatpush2.msra.mxu0 0.0
    %2517 = vmatprep.subr.mxu0 0.0
    %2518 = vmatpush2.msra.mxu0 0.0
    %2519 = vmatprep.subr.mxu0 0.0
    %2520 = vmatpush2.msra.mxu0 0.0
    %2521 = vmatprep.subr.mxu0 0.0
    %2522 = vmatpush2.msra.mxu0 0.0
    %2523 = vmatprep.mubr.f32.mxu0 0.0
    %v2524 = vand.u32 %v2043, 4294901760
    %2525 = vmatmul.mubr.f32.gmra.mxu0 %v2524
    %v2526 = vpop.f32.mrf.mxu0
    %v2527 = vadd.f32 %v2452, %v2526
    %v2528 = vpop.f32.mrf.mxu0
    %2529 = vdwg.mxu0
    %v2530 = vadd.f32 %v2527, %v1536
    %v2531 = vmul.f32 %v2530, 0.5
    %v2532 = vmul.f32 %v2530, 0.70710677
    %v2533 = verf.f32.pop %v2532
    %v2534 = vadd.f32 %v2533, 1.0
    %v2535 = vmul.f32 %v2531, %v2534
    %s2536 = scalar_lea.vmem [#allocation5], 200
    %v2537 = vld [vmem:[%s2536] sm:$0xff]
    %v2538 = vld [vmem:[%s2536 + $0x8] sm:$0xff]
    %v2539 = vld [vmem:[%s2536 + $0x10] sm:$0xff]
    %v2540 = vld [vmem:[%s2536 + $0x18] sm:$0xff]
    %v2541 = vld [vmem:[%s2536 + $0x20] sm:$0xff]
    %v2543 = vsel %vm44, %v2535, 0
    %2545 = vmatprep.subr.mxu0 0.0
    %2546 = vmatpush1.msra.mxu0 0.0
    %2547 = vmatprep.subr.mxu0 0.0
    %2548 = vmatpush1.msra.mxu0 0.0
    %2549 = vmatprep.subr.mxu0 0.0
    %2550 = vmatpush1.msra.mxu0 0.0
    %2551 = vmatprep.subr.mxu0 0.0
    %2552 = vmatpush1.msra.mxu0 0.0
    %2553 = vmatprep.subr.mxu0 0.0
    %2554 = vmatpush1.msra.mxu0 0.0
    %2555 = vmatprep.subr.mxu0 0.0
    %2556 = vmatpush1.msra.mxu0 0.0
    %2557 = vmatprep.subr.mxu0 0.0
    %2558 = vmatpush1.msra.mxu0 0.0
    %2559 = vmatprep.subr.mxu0 0.0
    %2560 = vmatpush1.msra.mxu0 0.0
    %2561 = vmatprep.subr.mxu0 0.0
    %2562 = vmatpush1.msra.mxu0 0.0
    %2563 = vmatprep.subr.mxu0 0.0
    %2564 = vmatpush1.msra.mxu0 0.0
    %2565 = vmatprep.subr.mxu0 0.0
    %2566 = vmatpush1.msra.mxu0 0.0
    %2567 = vmatprep.subr.mxu0 0.0
    %2568 = vmatpush1.msra.mxu0 0.0
    %2569 = vmatprep.subr.mxu0 0.0
    %v2570 = vand.u32 %v2540, 4294901760
    %2571 = vmatpush1.msra.mxu0 %v2570
    %2572 = vmatprep.subr.mxu0 0.0
    %v2573 = vand.u32 %v2539, 4294901760
    %2574 = vmatpush1.msra.mxu0 %v2573
    %2575 = vmatprep.subr.mxu0 0.0
    %v2576 = vand.u32 %v2538, 4294901760
    %2577 = vmatpush1.msra.mxu0 %v2576
    %2578 = vmatprep.subr.mxu0 0.0
    %v2579 = vand.u32 %v2537, 4294901760
    %2580 = vmatpush1.msra.mxu0 %v2579
    %2581 = vmatprep.subr.mxu0 0.0
    %2582 = vmatpush2.msra.mxu0 0.0
    %2583 = vmatprep.subr.mxu0 0.0
    %2584 = vmatpush2.msra.mxu0 0.0
    %2585 = vmatprep.subr.mxu0 0.0
    %2586 = vmatpush2.msra.mxu0 0.0
    %2587 = vmatprep.subr.mxu0 0.0
    %2588 = vmatpush2.msra.mxu0 0.0
    %2589 = vmatprep.subr.mxu0 0.0
    %2590 = vmatpush2.msra.mxu0 0.0
    %2591 = vmatprep.subr.mxu0 0.0
    %2592 = vmatpush2.msra.mxu0 0.0
    %2593 = vmatprep.subr.mxu0 0.0
    %2594 = vmatpush2.msra.mxu0 0.0
    %2595 = vmatprep.subr.mxu0 0.0
    %2596 = vmatpush2.msra.mxu0 0.0
    %2597 = vmatprep.subr.mxu0 0.0
    %2598 = vmatpush2.msra.mxu0 0.0
    %2599 = vmatprep.subr.mxu0 0.0
    %2600 = vmatpush2.msra.mxu0 0.0
    %2601 = vmatprep.subr.mxu0 0.0
    %2602 = vmatpush2.msra.mxu0 0.0
    %2603 = vmatprep.subr.mxu0 0.0
    %2604 = vmatpush2.msra.mxu0 0.0
    %2605 = vmatprep.subr.mxu0 0.0
    %2606 = vmatpush2.msra.mxu0 0.0
    %2607 = vmatprep.subr.mxu0 0.0
    %2608 = vmatpush2.msra.mxu0 0.0
    %2609 = vmatprep.subr.mxu0 0.0
    %2610 = vmatpush2.msra.mxu0 0.0
    %2611 = vmatprep.subr.mxu0 0.0
    %2612 = vmatpush2.msra.mxu0 0.0
    %2613 = vmatprep.mubr.f32.mxu0 0.0
    %v2614 = vand.u32 %v2543, 4294901760
    %v2615 = vsub.f32 %v2543, %v2614
    %v2616 = vand.u32 %v2615, 4294901760
    %v2617 = vsub.f32 %v2615, %v2616
    %v2618 = vand.u32 %v2617, 4294901760
    %2619 = vmatmul.mubr.f32.gmra.mxu0 %v2618
    %v2620 = vpop.f32.mrf.mxu0
    %v2621 = vadd.f32 %v2541, %v2620
    %v2622 = vpop.f32.mrf.mxu0
    %2623 = vdwg.mxu0
    %2624 = vmatprep.subr.mxu0 0.0
    %2625 = vmatpush1.msra.mxu0 0.0
    %2626 = vmatprep.subr.mxu0 0.0
    %2627 = vmatpush1.msra.mxu0 0.0
    %2628 = vmatprep.subr.mxu0 0.0
    %2629 = vmatpush1.msra.mxu0 0.0
    %2630 = vmatprep.subr.mxu0 0.0
    %2631 = vmatpush1.msra.mxu0 0.0
    %2632 = vmatprep.subr.mxu0 0.0
    %2633 = vmatpush1.msra.mxu0 0.0
    %2634 = vmatprep.subr.mxu0 0.0
    %2635 = vmatpush1.msra.mxu0 0.0
    %2636 = vmatprep.subr.mxu0 0.0
    %2637 = vmatpush1.msra.mxu0 0.0
    %2638 = vmatprep.subr.mxu0 0.0
    %2639 = vmatpush1.msra.mxu0 0.0
    %2640 = vmatprep.subr.mxu0 0.0
    %2641 = vmatpush1.msra.mxu0 0.0
    %2642 = vmatprep.subr.mxu0 0.0
    %2643 = vmatpush1.msra.mxu0 0.0
    %2644 = vmatprep.subr.mxu0 0.0
    %2645 = vmatpush1.msra.mxu0 0.0
    %2646 = vmatprep.subr.mxu0 0.0
    %2647 = vmatpush1.msra.mxu0 0.0
    %2648 = vmatprep.subr.mxu0 0.0
    %v2649 = vand.u32 %v2540, 4294901760
    %v2650 = vsub.f32 %v2540, %v2649
    %v2651 = vand.u32 %v2650, 4294901760
    %v2652 = vsub.f32 %v2650, %v2651
    %v2653 = vand.u32 %v2652, 4294901760
    %2654 = vmatpush1.msra.mxu0 %v2653
    %2655 = vmatprep.subr.mxu0 0.0
    %v2656 = vand.u32 %v2539, 4294901760
    %v2657 = vsub.f32 %v2539, %v2656
    %v2658 = vand.u32 %v2657, 4294901760
    %v2659 = vsub.f32 %v2657, %v2658
    %v2660 = vand.u32 %v2659, 4294901760
    %2661 = vmatpush1.msra.mxu0 %v2660
    %2662 = vmatprep.subr.mxu0 0.0
    %v2663 = vand.u32 %v2538, 4294901760
    %v2664 = vsub.f32 %v2538, %v2663
    %v2665 = vand.u32 %v2664, 4294901760
    %v2666 = vsub.f32 %v2664, %v2665
    %v2667 = vand.u32 %v2666, 4294901760
    %2668 = vmatpush1.msra.mxu0 %v2667
    %2669 = vmatprep.subr.mxu0 0.0
    %v2670 = vand.u32 %v2537, 4294901760
    %v2671 = vsub.f32 %v2537, %v2670
    %v2672 = vand.u32 %v2671, 4294901760
    %v2673 = vsub.f32 %v2671, %v2672
    %v2674 = vand.u32 %v2673, 4294901760
    %2675 = vmatpush1.msra.mxu0 %v2674
    %2676 = vmatprep.subr.mxu0 0.0
    %2677 = vmatpush2.msra.mxu0 0.0
    %2678 = vmatprep.subr.mxu0 0.0
    %2679 = vmatpush2.msra.mxu0 0.0
    %2680 = vmatprep.subr.mxu0 0.0
    %2681 = vmatpush2.msra.mxu0 0.0
    %2682 = vmatprep.subr.mxu0 0.0
    %2683 = vmatpush2.msra.mxu0 0.0
    %2684 = vmatprep.subr.mxu0 0.0
    %2685 = vmatpush2.msra.mxu0 0.0
    %2686 = vmatprep.subr.mxu0 0.0
    %2687 = vmatpush2.msra.mxu0 0.0
    %2688 = vmatprep.subr.mxu0 0.0
    %2689 = vmatpush2.msra.mxu0 0.0
    %2690 = vmatprep.subr.mxu0 0.0
    %2691 = vmatpush2.msra.mxu0 0.0
    %2692 = vmatprep.subr.mxu0 0.0
    %2693 = vmatpush2.msra.mxu0 0.0
    %2694 = vmatprep.subr.mxu0 0.0
    %2695 = vmatpush2.msra.mxu0 0.0
    %2696 = vmatprep.subr.mxu0 0.0
    %2697 = vmatpush2.msra.mxu0 0.0
    %2698 = vmatprep.subr.mxu0 0.0
    %2699 = vmatpush2.msra.mxu0 0.0
    %2700 = vmatprep.subr.mxu0 0.0
    %2701 = vmatpush2.msra.mxu0 0.0
    %2702 = vmatprep.subr.mxu0 0.0
    %2703 = vmatpush2.msra.mxu0 0.0
    %2704 = vmatprep.subr.mxu0 0.0
    %2705 = vmatpush2.msra.mxu0 0.0
    %2706 = vmatprep.subr.mxu0 0.0
    %2707 = vmatpush2.msra.mxu0 0.0
    %2708 = vmatprep.mubr.f32.mxu0 0.0
    %v2709 = vand.u32 %v2543, 4294901760
    %2710 = vmatmul.mubr.f32.gmra.mxu0 %v2709
    %v2711 = vpop.f32.mrf.mxu0
    %v2712 = vadd.f32 %v2621, %v2711
    %v2713 = vpop.f32.mrf.mxu0
    %2714 = vdwg.mxu0
    %2715 = vmatprep.subr.mxu0 0.0
    %2716 = vmatpush1.msra.mxu0 0.0
    %2717 = vmatprep.subr.mxu0 0.0
    %2718 = vmatpush1.msra.mxu0 0.0
    %2719 = vmatprep.subr.mxu0 0.0
    %2720 = vmatpush1.msra.mxu0 0.0
    %2721 = vmatprep.subr.mxu0 0.0
    %2722 = vmatpush1.msra.mxu0 0.0
    %2723 = vmatprep.subr.mxu0 0.0
    %2724 = vmatpush1.msra.mxu0 0.0
    %2725 = vmatprep.subr.mxu0 0.0
    %2726 = vmatpush1.msra.mxu0 0.0
    %2727 = vmatprep.subr.mxu0 0.0
    %2728 = vmatpush1.msra.mxu0 0.0
    %2729 = vmatprep.subr.mxu0 0.0
    %2730 = vmatpush1.msra.mxu0 0.0
    %2731 = vmatprep.subr.mxu0 0.0
    %2732 = vmatpush1.msra.mxu0 0.0
    %2733 = vmatprep.subr.mxu0 0.0
    %2734 = vmatpush1.msra.mxu0 0.0
    %2735 = vmatprep.subr.mxu0 0.0
    %2736 = vmatpush1.msra.mxu0 0.0
    %2737 = vmatprep.subr.mxu0 0.0
    %2738 = vmatpush1.msra.mxu0 0.0
    %2739 = vmatprep.subr.mxu0 0.0
    %v2740 = vand.u32 %v2540, 4294901760
    %v2741 = vsub.f32 %v2540, %v2740
    %2742 = vmatpush1.msra.mxu0 %v2741
    %2743 = vmatprep.subr.mxu0 0.0
    %v2744 = vand.u32 %v2539, 4294901760
    %v2745 = vsub.f32 %v2539, %v2744
    %2746 = vmatpush1.msra.mxu0 %v2745
    %2747 = vmatprep.subr.mxu0 0.0
    %v2748 = vand.u32 %v2538, 4294901760
    %v2749 = vsub.f32 %v2538, %v2748
    %2750 = vmatpush1.msra.mxu0 %v2749
    %2751 = vmatprep.subr.mxu0 0.0
    %v2752 = vand.u32 %v2537, 4294901760
    %v2753 = vsub.f32 %v2537, %v2752
    %2754 = vmatpush1.msra.mxu0 %v2753
    %2755 = vmatprep.subr.mxu0 0.0
    %2756 = vmatpush2.msra.mxu0 0.0
    %2757 = vmatprep.subr.mxu0 0.0
    %2758 = vmatpush2.msra.mxu0 0.0
    %2759 = vmatprep.subr.mxu0 0.0
    %2760 = vmatpush2.msra.mxu0 0.0
    %2761 = vmatprep.subr.mxu0 0.0
    %2762 = vmatpush2.msra.mxu0 0.0
    %2763 = vmatprep.subr.mxu0 0.0
    %2764 = vmatpush2.msra.mxu0 0.0
    %2765 = vmatprep.subr.mxu0 0.0
    %2766 = vmatpush2.msra.mxu0 0.0
    %2767 = vmatprep.subr.mxu0 0.0
    %2768 = vmatpush2.msra.mxu0 0.0
    %2769 = vmatprep.subr.mxu0 0.0
    %2770 = vmatpush2.msra.mxu0 0.0
    %2771 = vmatprep.subr.mxu0 0.0
    %2772 = vmatpush2.msra.mxu0 0.0
    %2773 = vmatprep.subr.mxu0 0.0
    %2774 = vmatpush2.msra.mxu0 0.0
    %2775 = vmatprep.subr.mxu0 0.0
    %2776 = vmatpush2.msra.mxu0 0.0
    %2777 = vmatprep.subr.mxu0 0.0
    %2778 = vmatpush2.msra.mxu0 0.0
    %2779 = vmatprep.subr.mxu0 0.0
    %2780 = vmatpush2.msra.mxu0 0.0
    %2781 = vmatprep.subr.mxu0 0.0
    %2782 = vmatpush2.msra.mxu0 0.0
    %2783 = vmatprep.subr.mxu0 0.0
    %2784 = vmatpush2.msra.mxu0 0.0
    %2785 = vmatprep.subr.mxu0 0.0
    %2786 = vmatpush2.msra.mxu0 0.0
    %2787 = vmatprep.mubr.f32.mxu0 0.0
    %v2788 = vand.u32 %v2543, 4294901760
    %v2789 = vsub.f32 %v2543, %v2788
    %2790 = vmatmul.mubr.f32.gmra.mxu0 %v2789
    %v2791 = vpop.f32.mrf.mxu0
    %v2792 = vadd.f32 %v2712, %v2791
    %v2793 = vpop.f32.mrf.mxu0
    %2794 = vdwg.mxu0
    %2795 = vmatprep.subr.mxu0 0.0
    %2796 = vmatpush1.msra.mxu0 0.0
    %2797 = vmatprep.subr.mxu0 0.0
    %2798 = vmatpush1.msra.mxu0 0.0
    %2799 = vmatprep.subr.mxu0 0.0
    %2800 = vmatpush1.msra.mxu0 0.0
    %2801 = vmatprep.subr.mxu0 0.0
    %2802 = vmatpush1.msra.mxu0 0.0
    %2803 = vmatprep.subr.mxu0 0.0
    %2804 = vmatpush1.msra.mxu0 0.0
    %2805 = vmatprep.subr.mxu0 0.0
    %2806 = vmatpush1.msra.mxu0 0.0
    %2807 = vmatprep.subr.mxu0 0.0
    %2808 = vmatpush1.msra.mxu0 0.0
    %2809 = vmatprep.subr.mxu0 0.0
    %2810 = vmatpush1.msra.mxu0 0.0
    %2811 = vmatprep.subr.mxu0 0.0
    %2812 = vmatpush1.msra.mxu0 0.0
    %2813 = vmatprep.subr.mxu0 0.0
    %2814 = vmatpush1.msra.mxu0 0.0
    %2815 = vmatprep.subr.mxu0 0.0
    %2816 = vmatpush1.msra.mxu0 0.0
    %2817 = vmatprep.subr.mxu0 0.0
    %2818 = vmatpush1.msra.mxu0 0.0
    %2819 = vmatprep.subr.mxu0 0.0
    %v2820 = vand.u32 %v2540, 4294901760
    %2821 = vmatpush1.msra.mxu0 %v2820
    %2822 = vmatprep.subr.mxu0 0.0
    %v2823 = vand.u32 %v2539, 4294901760
    %2824 = vmatpush1.msra.mxu0 %v2823
    %2825 = vmatprep.subr.mxu0 0.0
    %v2826 = vand.u32 %v2538, 4294901760
    %2827 = vmatpush1.msra.mxu0 %v2826
    %2828 = vmatprep.subr.mxu0 0.0
    %v2829 = vand.u32 %v2537, 4294901760
    %2830 = vmatpush1.msra.mxu0 %v2829
    %2831 = vmatprep.subr.mxu0 0.0
    %2832 = vmatpush2.msra.mxu0 0.0
    %2833 = vmatprep.subr.mxu0 0.0
    %2834 = vmatpush2.msra.mxu0 0.0
    %2835 = vmatprep.subr.mxu0 0.0
    %2836 = vmatpush2.msra.mxu0 0.0
    %2837 = vmatprep.subr.mxu0 0.0
    %2838 = vmatpush2.msra.mxu0 0.0
    %2839 = vmatprep.subr.mxu0 0.0
    %2840 = vmatpush2.msra.mxu0 0.0
    %2841 = vmatprep.subr.mxu0 0.0
    %2842 = vmatpush2.msra.mxu0 0.0
    %2843 = vmatprep.subr.mxu0 0.0
    %2844 = vmatpush2.msra.mxu0 0.0
    %2845 = vmatprep.subr.mxu0 0.0
    %2846 = vmatpush2.msra.mxu0 0.0
    %2847 = vmatprep.subr.mxu0 0.0
    %2848 = vmatpush2.msra.mxu0 0.0
    %2849 = vmatprep.subr.mxu0 0.0
    %2850 = vmatpush2.msra.mxu0 0.0
    %2851 = vmatprep.subr.mxu0 0.0
    %2852 = vmatpush2.msra.mxu0 0.0
    %2853 = vmatprep.subr.mxu0 0.0
    %2854 = vmatpush2.msra.mxu0 0.0
    %2855 = vmatprep.subr.mxu0 0.0
    %2856 = vmatpush2.msra.mxu0 0.0
    %2857 = vmatprep.subr.mxu0 0.0
    %2858 = vmatpush2.msra.mxu0 0.0
    %2859 = vmatprep.subr.mxu0 0.0
    %2860 = vmatpush2.msra.mxu0 0.0
    %2861 = vmatprep.subr.mxu0 0.0
    %2862 = vmatpush2.msra.mxu0 0.0
    %2863 = vmatprep.mubr.f32.mxu0 0.0
    %v2864 = vand.u32 %v2543, 4294901760
    %v2865 = vsub.f32 %v2543, %v2864
    %v2866 = vand.u32 %v2865, 4294901760
    %2867 = vmatmul.mubr.f32.gmra.mxu0 %v2866
    %v2868 = vpop.f32.mrf.mxu0
    %v2869 = vadd.f32 %v2792, %v2868
    %v2870 = vpop.f32.mrf.mxu0
    %2871 = vdwg.mxu0
    %2872 = vmatprep.subr.mxu0 0.0
    %2873 = vmatpush1.msra.mxu0 0.0
    %2874 = vmatprep.subr.mxu0 0.0
    %2875 = vmatpush1.msra.mxu0 0.0
    %2876 = vmatprep.subr.mxu0 0.0
    %2877 = vmatpush1.msra.mxu0 0.0
    %2878 = vmatprep.subr.mxu0 0.0
    %2879 = vmatpush1.msra.mxu0 0.0
    %2880 = vmatprep.subr.mxu0 0.0
    %2881 = vmatpush1.msra.mxu0 0.0
    %2882 = vmatprep.subr.mxu0 0.0
    %2883 = vmatpush1.msra.mxu0 0.0
    %2884 = vmatprep.subr.mxu0 0.0
    %2885 = vmatpush1.msra.mxu0 0.0
    %2886 = vmatprep.subr.mxu0 0.0
    %2887 = vmatpush1.msra.mxu0 0.0
    %2888 = vmatprep.subr.mxu0 0.0
    %2889 = vmatpush1.msra.mxu0 0.0
    %2890 = vmatprep.subr.mxu0 0.0
    %2891 = vmatpush1.msra.mxu0 0.0
    %2892 = vmatprep.subr.mxu0 0.0
    %2893 = vmatpush1.msra.mxu0 0.0
    %2894 = vmatprep.subr.mxu0 0.0
    %2895 = vmatpush1.msra.mxu0 0.0
    %2896 = vmatprep.subr.mxu0 0.0
    %v2897 = vand.u32 %v2540, 4294901760
    %v2898 = vsub.f32 %v2540, %v2897
    %v2899 = vand.u32 %v2898, 4294901760
    %2900 = vmatpush1.msra.mxu0 %v2899
    %2901 = vmatprep.subr.mxu0 0.0
    %v2902 = vand.u32 %v2539, 4294901760
    %v2903 = vsub.f32 %v2539, %v2902
    %v2904 = vand.u32 %v2903, 4294901760
    %2905 = vmatpush1.msra.mxu0 %v2904
    %2906 = vmatprep.subr.mxu0 0.0
    %v2907 = vand.u32 %v2538, 4294901760
    %v2908 = vsub.f32 %v2538, %v2907
    %v2909 = vand.u32 %v2908, 4294901760
    %2910 = vmatpush1.msra.mxu0 %v2909
    %2911 = vmatprep.subr.mxu0 0.0
    %v2912 = vand.u32 %v2537, 4294901760
    %v2913 = vsub.f32 %v2537, %v2912
    %v2914 = vand.u32 %v2913, 4294901760
    %2915 = vmatpush1.msra.mxu0 %v2914
    %2916 = vmatprep.subr.mxu0 0.0
    %2917 = vmatpush2.msra.mxu0 0.0
    %2918 = vmatprep.subr.mxu0 0.0
    %2919 = vmatpush2.msra.mxu0 0.0
    %2920 = vmatprep.subr.mxu0 0.0
    %2921 = vmatpush2.msra.mxu0 0.0
    %2922 = vmatprep.subr.mxu0 0.0
    %2923 = vmatpush2.msra.mxu0 0.0
    %2924 = vmatprep.subr.mxu0 0.0
    %2925 = vmatpush2.msra.mxu0 0.0
    %2926 = vmatprep.subr.mxu0 0.0
    %2927 = vmatpush2.msra.mxu0 0.0
    %2928 = vmatprep.subr.mxu0 0.0
    %2929 = vmatpush2.msra.mxu0 0.0
    %2930 = vmatprep.subr.mxu0 0.0
    %2931 = vmatpush2.msra.mxu0 0.0
    %2932 = vmatprep.subr.mxu0 0.0
    %2933 = vmatpush2.msra.mxu0 0.0
    %2934 = vmatprep.subr.mxu0 0.0
    %2935 = vmatpush2.msra.mxu0 0.0
    %2936 = vmatprep.subr.mxu0 0.0
    %2937 = vmatpush2.msra.mxu0 0.0
    %2938 = vmatprep.subr.mxu0 0.0
    %2939 = vmatpush2.msra.mxu0 0.0
    %2940 = vmatprep.subr.mxu0 0.0
    %2941 = vmatpush2.msra.mxu0 0.0
    %2942 = vmatprep.subr.mxu0 0.0
    %2943 = vmatpush2.msra.mxu0 0.0
    %2944 = vmatprep.subr.mxu0 0.0
    %2945 = vmatpush2.msra.mxu0 0.0
    %2946 = vmatprep.subr.mxu0 0.0
    %2947 = vmatpush2.msra.mxu0 0.0
    %2948 = vmatprep.mubr.f32.mxu0 0.0
    %v2949 = vand.u32 %v2543, 4294901760
    %2950 = vmatmul.mubr.f32.gmra.mxu0 %v2949
    %v2951 = vpop.f32.mrf.mxu0
    %v2952 = vadd.f32 %v2869, %v2951
    %v2953 = vpop.f32.mrf.mxu0
    %2954 = vdwg.mxu0
    %2955 = vmatprep.subr.mxu0 0.0
    %2956 = vmatpush1.msra.mxu0 0.0
    %2957 = vmatprep.subr.mxu0 0.0
    %2958 = vmatpush1.msra.mxu0 0.0
    %2959 = vmatprep.subr.mxu0 0.0
    %2960 = vmatpush1.msra.mxu0 0.0
    %2961 = vmatprep.subr.mxu0 0.0
    %2962 = vmatpush1.msra.mxu0 0.0
    %2963 = vmatprep.subr.mxu0 0.0
    %2964 = vmatpush1.msra.mxu0 0.0
    %2965 = vmatprep.subr.mxu0 0.0
    %2966 = vmatpush1.msra.mxu0 0.0
    %2967 = vmatprep.subr.mxu0 0.0
    %2968 = vmatpush1.msra.mxu0 0.0
    %2969 = vmatprep.subr.mxu0 0.0
    %2970 = vmatpush1.msra.mxu0 0.0
    %2971 = vmatprep.subr.mxu0 0.0
    %2972 = vmatpush1.msra.mxu0 0.0
    %2973 = vmatprep.subr.mxu0 0.0
    %2974 = vmatpush1.msra.mxu0 0.0
    %2975 = vmatprep.subr.mxu0 0.0
    %2976 = vmatpush1.msra.mxu0 0.0
    %2977 = vmatprep.subr.mxu0 0.0
    %2978 = vmatpush1.msra.mxu0 0.0
    %2979 = vmatprep.subr.mxu0 0.0
    %v2980 = vand.u32 %v2540, 4294901760
    %2981 = vmatpush1.msra.mxu0 %v2980
    %2982 = vmatprep.subr.mxu0 0.0
    %v2983 = vand.u32 %v2539, 4294901760
    %2984 = vmatpush1.msra.mxu0 %v2983
    %2985 = vmatprep.subr.mxu0 0.0
    %v2986 = vand.u32 %v2538, 4294901760
    %2987 = vmatpush1.msra.mxu0 %v2986
    %2988 = vmatprep.subr.mxu0 0.0
    %v2989 = vand.u32 %v2537, 4294901760
    %2990 = vmatpush1.msra.mxu0 %v2989
    %2991 = vmatprep.subr.mxu0 0.0
    %2992 = vmatpush2.msra.mxu0 0.0
    %2993 = vmatprep.subr.mxu0 0.0
    %2994 = vmatpush2.msra.mxu0 0.0
    %2995 = vmatprep.subr.mxu0 0.0
    %2996 = vmatpush2.msra.mxu0 0.0
    %2997 = vmatprep.subr.mxu0 0.0
    %2998 = vmatpush2.msra.mxu0 0.0
    %2999 = vmatprep.subr.mxu0 0.0
    %3000 = vmatpush2.msra.mxu0 0.0
    %3001 = vmatprep.subr.mxu0 0.0
    %3002 = vmatpush2.msra.mxu0 0.0
    %3003 = vmatprep.subr.mxu0 0.0
    %3004 = vmatpush2.msra.mxu0 0.0
    %3005 = vmatprep.subr.mxu0 0.0
    %3006 = vmatpush2.msra.mxu0 0.0
    %3007 = vmatprep.subr.mxu0 0.0
    %3008 = vmatpush2.msra.mxu0 0.0
    %3009 = vmatprep.subr.mxu0 0.0
    %3010 = vmatpush2.msra.mxu0 0.0
    %3011 = vmatprep.subr.mxu0 0.0
    %3012 = vmatpush2.msra.mxu0 0.0
    %3013 = vmatprep.subr.mxu0 0.0
    %3014 = vmatpush2.msra.mxu0 0.0
    %3015 = vmatprep.subr.mxu0 0.0
    %3016 = vmatpush2.msra.mxu0 0.0
    %3017 = vmatprep.subr.mxu0 0.0
    %3018 = vmatpush2.msra.mxu0 0.0
    %3019 = vmatprep.subr.mxu0 0.0
    %3020 = vmatpush2.msra.mxu0 0.0
    %3021 = vmatprep.subr.mxu0 0.0
    %3022 = vmatpush2.msra.mxu0 0.0
    %3023 = vmatprep.mubr.f32.mxu0 0.0
    %v3024 = vand.u32 %v2543, 4294901760
    %3025 = vmatmul.mubr.f32.gmra.mxu0 %v3024
    %v3026 = vpop.f32.mrf.mxu0
    %v3027 = vadd.f32 %v2952, %v3026
    %v3028 = vpop.f32.mrf.mxu0
    %3029 = vdwg.mxu0
    %3030 = vst [vmem:[#allocation7] sm:$0xff] %v3027
    // Predicated region
    $region18: #{linear_resnet_forward_padded.1} parent=1 // pred_check
      _
    $region19: #{linear_resnet_forward_padded.1} parent=1 // pred_check_branch
      %3032 = sbr.rel (0) target = $region21
    $region20: #{linear_resnet_forward_padded.1} parent=1 // pred_region
      %s3034 = ssub.s32 128, 128
      %3035 = vsyncadd [#allocation4], %s3034
      %s3037 = sshll.u32 [#allocation7], 4
      %s3038 = int_to_ptr.vmem [resolvable:$true] %s3037
      %3040 = dma.vmem_to_hbm [thread:$0]  %s3038, 128, %s2, [#allocation4]
    $region21: #{linear_resnet_forward_padded.1} parent=1 // pred_fallthru
      _
    // Predicated region
    $region22: #{linear_resnet_forward_padded.1} parent=1 // pred_check
      _
    $region23: #{linear_resnet_forward_padded.1} parent=1 // pred_check_branch
      %3042 = sbr.rel (0) target = $region25
    $region24: #{linear_resnet_forward_padded.1} parent=1 // pred_region
      %3043 = dma.done [#allocation4], 128
    $region25: #{linear_resnet_forward_padded.1} parent=1 // pred_fallthru
      _
    %3044 = vsyncpa [#allocation3], 1
    %3045 = vsyncpa [#allocation6], 1
    %3046 = vsyncpa [#allocation4], 1

</llo_original>
